<compile_context>
chip_gen: v7x
topology: tpu7x:2x2x1
jax: 0.10.0
libtpu: 0.0.40
codegen_flags: <defaults>
</compile_context>

<pallas_src>
import functools
import math

import jax
import jax.numpy as jnp
from jax.experimental import pallas as pl
from jax.experimental.pallas import tpu as pltpu

_MB = 1024 * 1024


def _layernorm(v, gamma, beta, eps=1e-5):
    mu = jnp.mean(v, axis=-1, keepdims=True)
    var = jnp.mean((v - mu) ** 2, axis=-1, keepdims=True)
    return (v - mu) * jax.lax.rsqrt(var + eps) * gamma + beta


# ----------------------------- prologue kernel -------------------------------
def _kv_projection_kernel(x_ref, gamma_ref, beta_ref, wkv_ref, bkv_ref, k_ref,
                          *, num_heads):
    """K (=V) = LayerNorm(X) @ Wkv + bkv, written head-major in bf16."""
    f32, bf16 = jnp.float32, jnp.bfloat16
    x = x_ref[0].astype(f32)                                    # (tkv, C)
    x_n = _layernorm(x, gamma_ref[...], beta_ref[...]).astype(bf16)
    kv = jnp.dot(x_n, wkv_ref[...], preferred_element_type=f32) + bkv_ref[...]
    kv = kv.astype(bf16)
    dh = kv.shape[-1] // num_heads
    for h in range(num_heads):                                  # head-major scatter
        k_ref[0, h] = kv[:, h * dh:(h + 1) * dh]


# ------------------------------- main kernel ---------------------------------
def _cross_attention_kernel(
    xm_ref, k_ref,
    gamma_ref, beta_ref,
    wq_ref, bq_ref,        # (C, C) bf16 (pre-scaled by 1/sqrt(512)), (1, C) f32
    wp_ref, bp_ref,        # (C, C) bf16, (1, C) f32
    w1_ref, b1_ref,        # (C, hidden) bf16, (1, hidden) f32
    w2_ref, b2_ref,        # (hidden, C) bf16, (1, C) f32
    out_ref,
    ctx_ref,               # (tm, C) bf16 VMEM scratch for per-head contexts
    *, num_heads, use_bf16_exp,
):
    f32, bf16 = jnp.float32, jnp.bfloat16
    xm = xm_ref[0].astype(f32)                                  # (tm, C) query slab
    gamma, beta = gamma_ref[...], beta_ref[...]
    tm, C = xm.shape
    dh = C // num_heads

    # --- shared LayerNorm + one full-width (C-wide) Q projection ---
    xm_n = _layernorm(xm, gamma, beta).astype(bf16)
    q = jnp.dot(xm_n, wq_ref[...], preferred_element_type=f32) + bq_ref[...]
    q = q.astype(bf16)

    # --- per-head attention; K (=V) is precomputed, head-major, bf16 ---
    for h in range(num_heads):
        q_h = q[:, h * dh:(h + 1) * dh]                         # (tm, Dh) static slice
        k_h = k_ref[0, h]                                       # (NX, Dh) leading-dim index
        s = jax.lax.dot_general(q_h, k_h, (((1,), (1,)), ((), ())),
                                preferred_element_type=f32)     # (tm, NX)
        s = s - jnp.max(s, axis=-1, keepdims=True)
        if use_bf16_exp:                                        # bf16 EUP on v6e/v7x
            p = jnp.exp(s.astype(bf16))
            denom = jnp.sum(p.astype(f32), axis=-1, keepdims=True)
        else:                                                   # f32 exp on v5e & older
            p_f = jnp.exp(s)
            denom = jnp.sum(p_f, axis=-1, keepdims=True)
            p = p_f.astype(bf16)
        ctx_h = jnp.dot(p, k_h, preferred_element_type=f32)     # (tm, Dh); V == K
        ctx_h = ctx_h * pl.reciprocal(denom, approx=True)       # normalize after PV
        ctx_ref[:, h * dh:(h + 1) * dh] = ctx_h.astype(bf16)

    # --- one full-width output projection + residual (dropout == identity) ---
    attn_out = jnp.dot(ctx_ref[...], wp_ref[...],
                       preferred_element_type=f32) + bp_ref[...]
    out1 = xm + attn_out

    # --- MLP block on layer_norm(out1) + residual ---
    out1_n = _layernorm(out1, gamma, beta).astype(bf16)
    h1 = jnp.dot(out1_n, w1_ref[...], preferred_element_type=f32) + b1_ref[...]
    h1 = jnp.maximum(h1, 0.0).astype(bf16)
    h2 = jnp.dot(h1, w2_ref[...], preferred_element_type=f32) + b2_ref[...]
    h2 = jnp.maximum(h2, 0.0)

    out_ref[0] = (out1 + h2).astype(out_ref.dtype)


# --------------------------------- wrapper -----------------------------------
def _device_kind():
    try:
        return jax.devices()[0].device_kind.lower()
    except Exception:
        return ""


def _hw_config():
    kind = _device_kind()
    is_v7 = ("v7" in kind) or ("tpu7" in kind) or ("7x" in kind)
    is_v6 = "v6" in kind
    vmem_cap = 48 * _MB if is_v7 else 100 * _MB     # 64 MiB phys on v7x, 128 elsewhere
    max_tile = 512 if is_v7 else 1024
    use_bf16_exp = is_v6 or is_v7                   # v5e and older: f32 EUP only
    return vmem_cap, max_tile, use_bf16_exp


def _pick_tile(n, tile, max_tile):
    if tile is not None:
        assert n % tile == 0 and (tile % 8 == 0 or tile == n)
        return tile
    if n <= max_tile:
        return n
    for t in (max_tile, max_tile // 2, max_tile // 4, 128):
        if t >= 8 and n % t == 0:
            return t
    return n  # fallback: no tiling (keeps BlockSpec legal for odd sizes)


def cross_attention(X_main, X, params, *, num_heads, q_tile=None, kv_tile=None):
    B, NM, C = X_main.shape
    _, NX, _ = X.shape
    assert C % num_heads == 0
    Dh = C // num_heads
    hidden = params["w1"].shape[1]

    vmem_cap, max_tile, use_bf16_exp = _hw_config()
    tm = _pick_tile(NM, q_tile, max_tile)
    tkv = _pick_tile(NX, kv_tile, max_tile)
    n_q_tiles = NM // tm
    n_kv_tiles = NX // tkv

    f32, bf16 = jnp.float32, jnp.bfloat16
    scale = 1.0 / math.sqrt(512.0)   # module hard-codes sqrt(512.0) regardless of head_dim

    # One-time weight prep: fold the score scale into Wq/bq, cast matmul operands
    # to bf16 (f32 accumulation in-kernel), keep biases / LN params in f32.
    wq = (params["wq"] * scale).astype(bf16)
    bq = (params["bq"] * scale).astype(f32)
    wkv = params["wkv"].astype(bf16)
    bkv = params["bkv"].astype(f32)
    wp = params["wp"].astype(bf16)
    bp = params["bp"].astype(f32)
    w1 = params["w1"].astype(bf16)
    b1 = params["b1"].astype(f32)
    w2 = params["w2"].astype(bf16)
    b2 = params["b2"].astype(f32)
    gamma = params["gamma"].astype(f32)
    beta = params["beta"].astype(f32)

    def _const_spec(shape, single_buffer):
        zeros = (0,) * len(shape)
        index_map = lambda b, i: zeros
        if single_buffer:
            # Constant blocks are never re-fetched; one VMEM buffer is enough.
            return pl.BlockSpec(shape, index_map, pipeline_mode=pl.Buffered(1))
        return pl.BlockSpec(shape, index_map)

    def _run(single_buffer):
        cs = lambda shape: _const_spec(shape, single_buffer)
        wf = 1 if single_buffer else 2

        # ------------------ prologue: K (=V) projection ------------------
        kv_weight_bytes = 2 * C * C + 4 * 3 * C
        kv_io_bytes = 2 * (tkv * C * 4) + 2 * (tkv * C * 2)
        kv_temp_bytes = 4 * (3 * tkv * C)
        kv_vmem = int(min(vmem_cap, max(
            32 * _MB, 2 * (wf * kv_weight_bytes + kv_io_bytes + kv_temp_bytes))))
        kv_cost = pl.CostEstimate(
            flops=int(2 * B * NX * C * C),
            transcendentals=int(B * NX),                    # LayerNorm rsqrt
            bytes_accessed=int(X.size * X.dtype.itemsize + B * NX * C * 2
                               + kv_weight_bytes))

        kv_grid = pltpu.PrefetchScalarGridSpec(
            num_scalar_prefetch=0,
            grid=(B, n_kv_tiles),
            in_specs=[
                pl.BlockSpec((1, tkv, C), lambda b, j: (b, j, 0)),   # X key/value tokens
                cs((1, C)), cs((1, C)),                              # gamma, beta
                cs((C, C)), cs((1, C)),                              # Wkv, bkv
            ],
            out_specs=pl.BlockSpec((1, num_heads, tkv, Dh),
                                   lambda b, j: (b, 0, j, 0)),
        )
        k_heads = pl.pallas_call(
            functools.partial(_kv_projection_kernel, num_heads=num_heads),
            out_shape=jax.ShapeDtypeStruct((B, num_heads, NX, Dh), bf16),
            grid_spec=kv_grid,
            compiler_params=pltpu.CompilerParams(
                dimension_semantics=("parallel", "parallel"),
                vmem_limit_bytes=kv_vmem),
            cost_estimate=kv_cost,
        )(X, gamma, beta, wkv, bkv)

        # ------------------ main: attention + MLP ------------------------
        weight_bytes = 2 * (2 * C * C + 2 * C * hidden) + 4 * (5 * C + hidden)
        io_bytes = 2 * (2 * tm * C * 4) + 2 * (NX * C * 2)
        temp_bytes = 4 * (6 * tm * C + 2 * tm * NX + 2 * tm * hidden) + 2 * tm * C
        attn_vmem = int(min(vmem_cap, max(
            32 * _MB, int(1.5 * (wf * weight_bytes + io_bytes + temp_bytes)))))
        attn_cost = pl.CostEstimate(
            flops=int(2 * B * NM * C * (2 * C + 2 * NX) + 4 * B * NM * C * hidden),
            transcendentals=int(B * num_heads * NM * (NX + 1)),
            bytes_accessed=int(X_main.size * X_main.dtype.itemsize * 2
                               + B * NX * C * 2 + weight_bytes))

        attn_grid = pltpu.PrefetchScalarGridSpec(
            num_scalar_prefetch=0,
            grid=(B, n_q_tiles),
            in_specs=[
                pl.BlockSpec((1, tm, C), lambda b, i: (b, i, 0)),            # query slab
                pl.BlockSpec((1, num_heads, NX, Dh), lambda b, i: (b, 0, 0, 0)),  # K (=V)
                cs((1, C)), cs((1, C)),                                      # gamma, beta
                cs((C, C)), cs((1, C)),                                      # Wq, bq (scaled)
                cs((C, C)), cs((1, C)),                                      # Wproj, bproj
                cs((C, hidden)), cs((1, hidden)),                            # W1, b1
                cs((hidden, C)), cs((1, C)),                                 # W2, b2
            ],
            out_specs=pl.BlockSpec((1, tm, C), lambda b, i: (b, i, 0)),
            scratch_shapes=[pltpu.VMEM((tm, C), bf16)],
        )
        return pl.pallas_call(
            functools.partial(_cross_attention_kernel, num_heads=num_heads,
                              use_bf16_exp=use_bf16_exp),
            out_shape=jax.ShapeDtypeStruct((B, NM, C), X_main.dtype),
            grid_spec=attn_grid,
            compiler_params=pltpu.CompilerParams(
                dimension_semantics=("parallel", "parallel"),
                vmem_limit_bytes=attn_vmem),
            cost_estimate=attn_cost,
        )(X_main, k_heads, gamma, beta, wq, bq, wp, bp, w1, b1, w2, b2)

    try:
        return _run(single_buffer=True)
    except Exception:
        # pipeline_mode=pl.Buffered(1) not supported by this JAX build for TPU
        # pallas_call: fall back to default double-buffered constant blocks
        # (identical math, slightly more VMEM).  Note: the fallback only triggers
        # under eager execution; wrap this call in jax.jit only after it has run
        # once eagerly.
        return _run(single_buffer=False)


# ------------------------------ params / reference ---------------------------
def init_params(key, dim, mlp_ratio=4):
    hidden = dim * mlp_ratio
    ks = jax.random.split(key, 10)

    def linear(kw, kb, fan_in, fan_out):
        # PyTorch nn.Linear default init: U(-1/sqrt(fan_in), 1/sqrt(fan_in));
        # weight stored here as (in, out) so math is x @ W + b.
        bound = 1.0 / math.sqrt(fan_in)
        w = jax.random.uniform(kw, (fan_in, fan_out), jnp.float32, -bound, bound)
        b = jax.random.uniform(kb, (1, fan_out), jnp.float32, -bound, bound)
        return w, b

    wq, bq = linear(ks[0], ks[1], dim, dim)
    wkv, bkv = linear(ks[2], ks[3], dim, dim)
    wp, bp = linear(ks[4], ks[5], dim, dim)
    w1, b1 = linear(ks[6], ks[7], dim, hidden)
    w2, b2 = linear(ks[8], ks[9], hidden, dim)

    return dict(
        gamma=jnp.ones((1, dim), jnp.float32),
        beta=jnp.zeros((1, dim), jnp.float32),
        wq=wq, bq=bq, wkv=wkv, bkv=bkv, wp=wp, bp=bp,
        w1=w1, b1=b1, w2=w2, b2=b2,
    )


def reference(X_main, X, params, *, num_heads):
    """Pure-JAX f32 reference mirroring the PyTorch forward (eval mode)."""
    g, b = params["gamma"][0], params["beta"][0]
    ln = lambda v: _layernorm(v, g, b)
    B, NM, C = X_main.shape
    NX = X.shape[1]
    Dh = C // num_heads

    xm_n, x_n = ln(X_main), ln(X)
    q = xm_n @ params["wq"] + params["bq"][0]
    kv = x_n @ params["wkv"] + params["bkv"][0]
    qh = q.reshape(B, NM, num_heads, Dh).transpose(0, 2, 1, 3)
    kvh = kv.reshape(B, NX, num_heads, Dh).transpose(0, 2, 1, 3)
    scores = jnp.einsum("bhmd,bhnd->bhmn", qh, kvh) / jnp.sqrt(512.0)
    attn = jax.nn.softmax(scores, axis=-1)
    ctx = jnp.einsum("bhmn,bhnd->bhmd", attn, kvh).transpose(0, 2, 1, 3).reshape(B, NM, C)
    out1 = X_main + (ctx @ params["wp"] + params["bp"][0])
    h = jax.nn.relu(ln(out1) @ params["w1"] + params["b1"][0])
    m = jax.nn.relu(h @ params["w2"] + params["b2"][0])
    return out1 + m


if __name__ == "__main__":
    key = jax.random.PRNGKey(0)
    k_xm, k_x, k_p = jax.random.split(key, 3)

    B, NM, NX, C, H = 2, 16, 8, 128, 8
    X_main = jax.random.normal(k_xm, (B, NM, C), jnp.float32)
    X = jax.random.normal(k_x, (B, NX, C), jnp.float32)
    params = init_params(k_p, C, mlp_ratio=4)

    # q_tile=8 exercises the (batch, query-tile) grid even at toy sizes.
    out = cross_attention(X_main, X, params, num_heads=H, q_tile=8)
    out = jax.block_until_ready(out)

    ref = reference(X_main, X, params, num_heads=H)
    assert out.shape == (B, NM, C)
    max_err = float(jnp.max(jnp.abs(out - ref)))
    # bf16 matmul operands / bf16 softmax probs (f32 accumulation) vs f32 reference.
    assert jnp.allclose(out, ref, atol=3e-2, rtol=3e-2), max_err
    print("KERNEL_OK")
</pallas_src>

<mosaic_0001>
module attributes {stable_mosaic.version = 11 : i64} {
  func.func @_kv_projection_kernel(%arg0: i32, %arg1: i32, %arg2: memref<1x8x128xf32, #tpu.memory_space<vmem>>, %arg3: memref<1x128xf32, #tpu.memory_space<vmem>>, %arg4: memref<1x128xf32, #tpu.memory_space<vmem>>, %arg5: memref<128x128xbf16, #tpu.memory_space<vmem>>, %arg6: memref<1x128xf32, #tpu.memory_space<vmem>>, %arg7: memref<1x8x8x16xbf16, #tpu.memory_space<vmem>>) attributes {dimension_semantics = [#tpu.dimension_semantics<parallel>, #tpu.dimension_semantics<parallel>], iteration_bounds = array<i64: 2, 1>, scalar_prefetch = 0 : i64, scratch_operands = 0 : i64, tpu.core_type = #tpu.core_type<tc>, window_params = [{transform_indices = @transform_0, window_bounds = array<i64: 1, 8, 128>}, {pipeline_mode = #tpu.pipeline_mode<synchronous>, transform_indices = @transform_1, window_bounds = array<i64: 1, 128>}, {pipeline_mode = #tpu.pipeline_mode<synchronous>, transform_indices = @transform_2, window_bounds = array<i64: 1, 128>}, {pipeline_mode = #tpu.pipeline_mode<synchronous>, transform_indices = @transform_3, window_bounds = array<i64: 128, 128>}, {pipeline_mode = #tpu.pipeline_mode<synchronous>, transform_indices = @transform_4, window_bounds = array<i64: 1, 128>}, {transform_indices = @transform_5, window_bounds = array<i64: 1, 8, 8, 16>}]} {
    %c0 = arith.constant 0 : index
    %c0_0 = arith.constant 0 : index
    %c0_1 = arith.constant 0 : index
    %0 = vector.load %arg2[%c0, %c0_0, %c0_1] : memref<1x8x128xf32, #tpu.memory_space<vmem>>, vector<1x8x128xf32>
    %1 = vector.shape_cast %0 : vector<1x8x128xf32> to vector<8x128xf32>
    %c0_2 = arith.constant 0 : index
    %c0_3 = arith.constant 0 : index
    %2 = vector.load %arg3[%c0_2, %c0_3] : memref<1x128xf32, #tpu.memory_space<vmem>>, vector<1x128xf32>
    %c0_4 = arith.constant 0 : index
    %c0_5 = arith.constant 0 : index
    %3 = vector.load %arg4[%c0_4, %c0_5] : memref<1x128xf32, #tpu.memory_space<vmem>>, vector<1x128xf32>
    %cst = arith.constant dense<0.000000e+00> : vector<8xf32>
    %4 = vector.multi_reduction <add>, %1, %cst [1] : vector<8x128xf32> to vector<8xf32>
    %5 = vector.shape_cast %4 : vector<8xf32> to vector<8x1xf32>
    %cst_6 = arith.constant 1.280000e+02 : f32
    %6 = vector.broadcast %cst_6 : f32 to vector<8x1xf32>
    %7 = arith.divf %5, %6 : vector<8x1xf32>
    %8 = vector.broadcast %7 : vector<8x1xf32> to vector<8x128xf32>
    %9 = arith.subf %1, %8 : vector<8x128xf32>
    %10 = arith.mulf %9, %9 : vector<8x128xf32>
    %cst_7 = arith.constant dense<0.000000e+00> : vector<8xf32>
    %11 = vector.multi_reduction <add>, %10, %cst_7 [1] : vector<8x128xf32> to vector<8xf32>
    %12 = vector.shape_cast %11 : vector<8xf32> to vector<8x1xf32>
    %cst_8 = arith.constant 1.280000e+02 : f32
    %13 = vector.broadcast %cst_8 : f32 to vector<8x1xf32>
    %14 = arith.divf %12, %13 : vector<8x1xf32>
    %15 = vector.broadcast %7 : vector<8x1xf32> to vector<8x128xf32>
    %16 = arith.subf %1, %15 : vector<8x128xf32>
    %cst_9 = arith.constant 9.99999974E-6 : f32
    %17 = vector.broadcast %cst_9 : f32 to vector<8x1xf32>
    %18 = arith.addf %14, %17 : vector<8x1xf32>
    %19 = math.rsqrt %18 : vector<8x1xf32>
    %20 = vector.broadcast %19 : vector<8x1xf32> to vector<8x128xf32>
    %21 = arith.mulf %16, %20 : vector<8x128xf32>
    %22 = vector.broadcast %2 : vector<1x128xf32> to vector<8x128xf32>
    %23 = arith.mulf %21, %22 : vector<8x128xf32>
    %24 = vector.broadcast %3 : vector<1x128xf32> to vector<8x128xf32>
    %25 = arith.addf %23, %24 : vector<8x128xf32>
    %26 = arith.truncf %25 : vector<8x128xf32> to vector<8x128xbf16>
    %c0_10 = arith.constant 0 : index
    %c0_11 = arith.constant 0 : index
    %27 = vector.load %arg5[%c0_10, %c0_11] : memref<128x128xbf16, #tpu.memory_space<vmem>>, vector<128x128xbf16>
    %cst_12 = arith.constant dense<0.000000e+00> : vector<8x128xf32>
    %28 = tpu.matmul %26, %27, %cst_12 {dimension_numbers = #tpu.dot_dimension_numbers<[1], [0], [0], [1], [0, 0, 1, 1], [], []>} : vector<8x128xbf16>, vector<128x128xbf16>, vector<8x128xf32> -> vector<8x128xf32>
    %c0_13 = arith.constant 0 : index
    %c0_14 = arith.constant 0 : index
    %29 = vector.load %arg6[%c0_13, %c0_14] : memref<1x128xf32, #tpu.memory_space<vmem>>, vector<1x128xf32>
    %30 = vector.broadcast %29 : vector<1x128xf32> to vector<8x128xf32>
    %31 = arith.addf %28, %30 : vector<8x128xf32>
    %32 = arith.truncf %31 : vector<8x128xf32> to vector<8x128xbf16>
    %33 = vector.extract_strided_slice %32 {offsets = [0, 0], sizes = [8, 16], strides = [1, 1]} : vector<8x128xbf16> to vector<8x16xbf16>
    %c0_15 = arith.constant 0 : index
    %c0_16 = arith.constant 0 : index
    %c0_17 = arith.constant 0 : index
    %c0_18 = arith.constant 0 : index
    %34 = vector.load %arg7[%c0_15, %c0_16, %c0_17, %c0_18] : memref<1x8x8x16xbf16, #tpu.memory_space<vmem>>, vector<1x1x8x16xbf16>
    %35 = vector.shape_cast %34 : vector<1x1x8x16xbf16> to vector<8x16xbf16>
    %36 = vector.shape_cast %33 : vector<8x16xbf16> to vector<1x1x8x16xbf16>
    tpu.vector_store %arg7[%c0_15, %c0_16, %c0_17, %c0_18], %36 {strides = array<i32>} : memref<1x8x8x16xbf16, #tpu.memory_space<vmem>>, vector<1x1x8x16xbf16>,
    %37 = vector.extract_strided_slice %32 {offsets = [0, 16], sizes = [8, 16], strides = [1, 1]} : vector<8x128xbf16> to vector<8x16xbf16>
    %c0_19 = arith.constant 0 : index
    %c1 = arith.constant 1 : index
    %c0_20 = arith.constant 0 : index
    %c0_21 = arith.constant 0 : index
    %38 = vector.load %arg7[%c0_19, %c1, %c0_20, %c0_21] : memref<1x8x8x16xbf16, #tpu.memory_space<vmem>>, vector<1x1x8x16xbf16>
    %39 = vector.shape_cast %38 : vector<1x1x8x16xbf16> to vector<8x16xbf16>
    %40 = vector.shape_cast %37 : vector<8x16xbf16> to vector<1x1x8x16xbf16>
    tpu.vector_store %arg7[%c0_19, %c1, %c0_20, %c0_21], %40 {strides = array<i32>} : memref<1x8x8x16xbf16, #tpu.memory_space<vmem>>, vector<1x1x8x16xbf16>,
    %41 = vector.extract_strided_slice %32 {offsets = [0, 32], sizes = [8, 16], strides = [1, 1]} : vector<8x128xbf16> to vector<8x16xbf16>
    %c0_22 = arith.constant 0 : index
    %c2 = arith.constant 2 : index
    %c0_23 = arith.constant 0 : index
    %c0_24 = arith.constant 0 : index
    %42 = vector.load %arg7[%c0_22, %c2, %c0_23, %c0_24] : memref<1x8x8x16xbf16, #tpu.memory_space<vmem>>, vector<1x1x8x16xbf16>
    %43 = vector.shape_cast %42 : vector<1x1x8x16xbf16> to vector<8x16xbf16>
    %44 = vector.shape_cast %41 : vector<8x16xbf16> to vector<1x1x8x16xbf16>
    tpu.vector_store %arg7[%c0_22, %c2, %c0_23, %c0_24], %44 {strides = array<i32>} : memref<1x8x8x16xbf16, #tpu.memory_space<vmem>>, vector<1x1x8x16xbf16>,
    %45 = vector.extract_strided_slice %32 {offsets = [0, 48], sizes = [8, 16], strides = [1, 1]} : vector<8x128xbf16> to vector<8x16xbf16>
    %c0_25 = arith.constant 0 : index
    %c3 = arith.constant 3 : index
    %c0_26 = arith.constant 0 : index
    %c0_27 = arith.constant 0 : index
    %46 = vector.load %arg7[%c0_25, %c3, %c0_26, %c0_27] : memref<1x8x8x16xbf16, #tpu.memory_space<vmem>>, vector<1x1x8x16xbf16>
    %47 = vector.shape_cast %46 : vector<1x1x8x16xbf16> to vector<8x16xbf16>
    %48 = vector.shape_cast %45 : vector<8x16xbf16> to vector<1x1x8x16xbf16>
    tpu.vector_store %arg7[%c0_25, %c3, %c0_26, %c0_27], %48 {strides = array<i32>} : memref<1x8x8x16xbf16, #tpu.memory_space<vmem>>, vector<1x1x8x16xbf16>,
    %49 = vector.extract_strided_slice %32 {offsets = [0, 64], sizes = [8, 16], strides = [1, 1]} : vector<8x128xbf16> to vector<8x16xbf16>
    %c0_28 = arith.constant 0 : index
    %c4 = arith.constant 4 : index
    %c0_29 = arith.constant 0 : index
    %c0_30 = arith.constant 0 : index
    %50 = vector.load %arg7[%c0_28, %c4, %c0_29, %c0_30] : memref<1x8x8x16xbf16, #tpu.memory_space<vmem>>, vector<1x1x8x16xbf16>
    %51 = vector.shape_cast %50 : vector<1x1x8x16xbf16> to vector<8x16xbf16>
    %52 = vector.shape_cast %49 : vector<8x16xbf16> to vector<1x1x8x16xbf16>
    tpu.vector_store %arg7[%c0_28, %c4, %c0_29, %c0_30], %52 {strides = array<i32>} : memref<1x8x8x16xbf16, #tpu.memory_space<vmem>>, vector<1x1x8x16xbf16>,
    %53 = vector.extract_strided_slice %32 {offsets = [0, 80], sizes = [8, 16], strides = [1, 1]} : vector<8x128xbf16> to vector<8x16xbf16>
    %c0_31 = arith.constant 0 : index
    %c5 = arith.constant 5 : index
    %c0_32 = arith.constant 0 : index
    %c0_33 = arith.constant 0 : index
    %54 = vector.load %arg7[%c0_31, %c5, %c0_32, %c0_33] : memref<1x8x8x16xbf16, #tpu.memory_space<vmem>>, vector<1x1x8x16xbf16>
    %55 = vector.shape_cast %54 : vector<1x1x8x16xbf16> to vector<8x16xbf16>
    %56 = vector.shape_cast %53 : vector<8x16xbf16> to vector<1x1x8x16xbf16>
    tpu.vector_store %arg7[%c0_31, %c5, %c0_32, %c0_33], %56 {strides = array<i32>} : memref<1x8x8x16xbf16, #tpu.memory_space<vmem>>, vector<1x1x8x16xbf16>,
    %57 = vector.extract_strided_slice %32 {offsets = [0, 96], sizes = [8, 16], strides = [1, 1]} : vector<8x128xbf16> to vector<8x16xbf16>
    %c0_34 = arith.constant 0 : index
    %c6 = arith.constant 6 : index
    %c0_35 = arith.constant 0 : index
    %c0_36 = arith.constant 0 : index
    %58 = vector.load %arg7[%c0_34, %c6, %c0_35, %c0_36] : memref<1x8x8x16xbf16, #tpu.memory_space<vmem>>, vector<1x1x8x16xbf16>
    %59 = vector.shape_cast %58 : vector<1x1x8x16xbf16> to vector<8x16xbf16>
    %60 = vector.shape_cast %57 : vector<8x16xbf16> to vector<1x1x8x16xbf16>
    tpu.vector_store %arg7[%c0_34, %c6, %c0_35, %c0_36], %60 {strides = array<i32>} : memref<1x8x8x16xbf16, #tpu.memory_space<vmem>>, vector<1x1x8x16xbf16>,
    %61 = vector.extract_strided_slice %32 {offsets = [0, 112], sizes = [8, 16], strides = [1, 1]} : vector<8x128xbf16> to vector<8x16xbf16>
    %c0_37 = arith.constant 0 : index
    %c7 = arith.constant 7 : index
    %c0_38 = arith.constant 0 : index
    %c0_39 = arith.constant 0 : index
    %62 = vector.load %arg7[%c0_37, %c7, %c0_38, %c0_39] : memref<1x8x8x16xbf16, #tpu.memory_space<vmem>>, vector<1x1x8x16xbf16>
    %63 = vector.shape_cast %62 : vector<1x1x8x16xbf16> to vector<8x16xbf16>
    %64 = vector.shape_cast %61 : vector<8x16xbf16> to vector<1x1x8x16xbf16>
    tpu.vector_store %arg7[%c0_37, %c7, %c0_38, %c0_39], %64 {strides = array<i32>} : memref<1x8x8x16xbf16, #tpu.memory_space<vmem>>, vector<1x1x8x16xbf16>,
    return
  }
  func.func @transform_0(%arg0: i32, %arg1: i32) -> (i32, i32, i32) {
    %c0_i32 = arith.constant 0 : i32
    %c0_i32_0 = arith.constant 0 : i32
    return %arg0, %arg1, %c0_i32 : i32, i32, i32
  }
  func.func @transform_1(%arg0: i32, %arg1: i32) -> (i32, i32) {
    %c0_i32 = arith.constant 0 : i32
    %c0_i32_0 = arith.constant 0 : i32
    %c0_i32_1 = arith.constant 0 : i32
    return %c0_i32, %c0_i32_0 : i32, i32
  }
  func.func @transform_2(%arg0: i32, %arg1: i32) -> (i32, i32) {
    %c0_i32 = arith.constant 0 : i32
    %c0_i32_0 = arith.constant 0 : i32
    %c0_i32_1 = arith.constant 0 : i32
    return %c0_i32, %c0_i32_0 : i32, i32
  }
  func.func @transform_3(%arg0: i32, %arg1: i32) -> (i32, i32) {
    %c0_i32 = arith.constant 0 : i32
    %c0_i32_0 = arith.constant 0 : i32
    %c0_i32_1 = arith.constant 0 : i32
    return %c0_i32, %c0_i32_0 : i32, i32
  }
  func.func @transform_4(%arg0: i32, %arg1: i32) -> (i32, i32) {
    %c0_i32 = arith.constant 0 : i32
    %c0_i32_0 = arith.constant 0 : i32
    %c0_i32_1 = arith.constant 0 : i32
    return %c0_i32, %c0_i32_0 : i32, i32
  }
  func.func @transform_5(%arg0: i32, %arg1: i32) -> (i32, i32, i32, i32) {
    %c0_i32 = arith.constant 0 : i32
    %c0_i32_0 = arith.constant 0 : i32
    %c0_i32_1 = arith.constant 0 : i32
    return %arg0, %c0_i32, %arg1, %c0_i32_0 : i32, i32, i32, i32
  }
}

module attributes {stable_mosaic.version = 11 : i64} {
  func.func @_kv_projection_kernel(%arg0: i32, %arg1: i32, %arg2: memref<1x8x128xf32, #tpu.memory_space<vmem>>, %arg3: memref<1x128xf32, #tpu.memory_space<vmem>>, %arg4: memref<1x128xf32, #tpu.memory_space<vmem>>, %arg5: memref<128x128xbf16, #tpu.memory_space<vmem>>, %arg6: memref<1x128xf32, #tpu.memory_space<vmem>>, %arg7: memref<1x8x8x16xbf16, #tpu.memory_space<vmem>>) attributes {dimension_semantics = [#tpu.dimension_semantics<parallel>, #tpu.dimension_semantics<parallel>], iteration_bounds = array<i64: 2, 1>, scalar_prefetch = 0 : i64, scratch_operands = 0 : i64, tpu.core_type = #tpu.core_type<tc>, window_params = [{transform_indices = @transform_0, window_bounds = array<i64: 1, 8, 128>}, {pipeline_mode = #tpu.pipeline_mode<synchronous>, transform_indices = @transform_1, window_bounds = array<i64: 1, 128>}, {pipeline_mode = #tpu.pipeline_mode<synchronous>, transform_indices = @transform_2, window_bounds = array<i64: 1, 128>}, {pipeline_mode = #tpu.pipeline_mode<synchronous>, transform_indices = @transform_3, window_bounds = array<i64: 128, 128>}, {pipeline_mode = #tpu.pipeline_mode<synchronous>, transform_indices = @transform_4, window_bounds = array<i64: 1, 128>}, {transform_indices = @transform_5, window_bounds = array<i64: 1, 8, 8, 16>}]} {
    %c0 = arith.constant 0 : index
    %c0_0 = arith.constant 0 : index
    %c0_1 = arith.constant 0 : index
    %0 = vector.load %arg2[%c0, %c0_0, %c0_1] : memref<1x8x128xf32, #tpu.memory_space<vmem>>, vector<1x8x128xf32>
    %1 = vector.shape_cast %0 : vector<1x8x128xf32> to vector<8x128xf32>
    %c0_2 = arith.constant 0 : index
    %c0_3 = arith.constant 0 : index
    %2 = vector.load %arg3[%c0_2, %c0_3] : memref<1x128xf32, #tpu.memory_space<vmem>>, vector<1x128xf32>
    %c0_4 = arith.constant 0 : index
    %c0_5 = arith.constant 0 : index
    %3 = vector.load %arg4[%c0_4, %c0_5] : memref<1x128xf32, #tpu.memory_space<vmem>>, vector<1x128xf32>
    %cst = arith.constant dense<0.000000e+00> : vector<8xf32>
    %4 = vector.multi_reduction <add>, %1, %cst [1] : vector<8x128xf32> to vector<8xf32>
    %5 = vector.shape_cast %4 : vector<8xf32> to vector<8x1xf32>
    %cst_6 = arith.constant 1.280000e+02 : f32
    %6 = vector.broadcast %cst_6 : f32 to vector<8x1xf32>
    %7 = arith.divf %5, %6 : vector<8x1xf32>
    %8 = vector.broadcast %7 : vector<8x1xf32> to vector<8x128xf32>
    %9 = arith.subf %1, %8 : vector<8x128xf32>
    %10 = arith.mulf %9, %9 : vector<8x128xf32>
    %cst_7 = arith.constant dense<0.000000e+00> : vector<8xf32>
    %11 = vector.multi_reduction <add>, %10, %cst_7 [1] : vector<8x128xf32> to vector<8xf32>
    %12 = vector.shape_cast %11 : vector<8xf32> to vector<8x1xf32>
    %cst_8 = arith.constant 1.280000e+02 : f32
    %13 = vector.broadcast %cst_8 : f32 to vector<8x1xf32>
    %14 = arith.divf %12, %13 : vector<8x1xf32>
    %15 = vector.broadcast %7 : vector<8x1xf32> to vector<8x128xf32>
    %16 = arith.subf %1, %15 : vector<8x128xf32>
    %cst_9 = arith.constant 9.99999974E-6 : f32
    %17 = vector.broadcast %cst_9 : f32 to vector<8x1xf32>
    %18 = arith.addf %14, %17 : vector<8x1xf32>
    %19 = math.rsqrt %18 : vector<8x1xf32>
    %20 = vector.broadcast %19 : vector<8x1xf32> to vector<8x128xf32>
    %21 = arith.mulf %16, %20 : vector<8x128xf32>
    %22 = vector.broadcast %2 : vector<1x128xf32> to vector<8x128xf32>
    %23 = arith.mulf %21, %22 : vector<8x128xf32>
    %24 = vector.broadcast %3 : vector<1x128xf32> to vector<8x128xf32>
    %25 = arith.addf %23, %24 : vector<8x128xf32>
    %26 = arith.truncf %25 : vector<8x128xf32> to vector<8x128xbf16>
    %c0_10 = arith.constant 0 : index
    %c0_11 = arith.constant 0 : index
    %27 = vector.load %arg5[%c0_10, %c0_11] : memref<128x128xbf16, #tpu.memory_space<vmem>>, vector<128x128xbf16>
    %cst_12 = arith.constant dense<0.000000e+00> : vector<8x128xf32>
    %28 = tpu.matmul %26, %27, %cst_12 {dimension_numbers = #tpu.dot_dimension_numbers<[1], [0], [0], [1], [0, 0, 1, 1], [], []>} : vector<8x128xbf16>, vector<128x128xbf16>, vector<8x128xf32> -> vector<8x128xf32>
    %c0_13 = arith.constant 0 : index
    %c0_14 = arith.constant 0 : index
    %29 = vector.load %arg6[%c0_13, %c0_14] : memref<1x128xf32, #tpu.memory_space<vmem>>, vector<1x128xf32>
    %30 = vector.broadcast %29 : vector<1x128xf32> to vector<8x128xf32>
    %31 = arith.addf %28, %30 : vector<8x128xf32>
    %32 = arith.truncf %31 : vector<8x128xf32> to vector<8x128xbf16>
    %33 = vector.extract_strided_slice %32 {offsets = [0, 0], sizes = [8, 16], strides = [1, 1]} : vector<8x128xbf16> to vector<8x16xbf16>
    %c0_15 = arith.constant 0 : index
    %c0_16 = arith.constant 0 : index
    %c0_17 = arith.constant 0 : index
    %c0_18 = arith.constant 0 : index
    %34 = vector.load %arg7[%c0_15, %c0_16, %c0_17, %c0_18] : memref<1x8x8x16xbf16, #tpu.memory_space<vmem>>, vector<1x1x8x16xbf16>
    %35 = vector.shape_cast %34 : vector<1x1x8x16xbf16> to vector<8x16xbf16>
    %36 = vector.shape_cast %33 : vector<8x16xbf16> to vector<1x1x8x16xbf16>
    tpu.vector_store %arg7[%c0_15, %c0_16, %c0_17, %c0_18], %36 {strides = array<i32>} : memref<1x8x8x16xbf16, #tpu.memory_space<vmem>>, vector<1x1x8x16xbf16>,
    %37 = vector.extract_strided_slice %32 {offsets = [0, 16], sizes = [8, 16], strides = [1, 1]} : vector<8x128xbf16> to vector<8x16xbf16>
    %c0_19 = arith.constant 0 : index
    %c1 = arith.constant 1 : index
    %c0_20 = arith.constant 0 : index
    %c0_21 = arith.constant 0 : index
    %38 = vector.load %arg7[%c0_19, %c1, %c0_20, %c0_21] : memref<1x8x8x16xbf16, #tpu.memory_space<vmem>>, vector<1x1x8x16xbf16>
    %39 = vector.shape_cast %38 : vector<1x1x8x16xbf16> to vector<8x16xbf16>
    %40 = vector.shape_cast %37 : vector<8x16xbf16> to vector<1x1x8x16xbf16>
    tpu.vector_store %arg7[%c0_19, %c1, %c0_20, %c0_21], %40 {strides = array<i32>} : memref<1x8x8x16xbf16, #tpu.memory_space<vmem>>, vector<1x1x8x16xbf16>,
    %41 = vector.extract_strided_slice %32 {offsets = [0, 32], sizes = [8, 16], strides = [1, 1]} : vector<8x128xbf16> to vector<8x16xbf16>
    %c0_22 = arith.constant 0 : index
    %c2 = arith.constant 2 : index
    %c0_23 = arith.constant 0 : index
    %c0_24 = arith.constant 0 : index
    %42 = vector.load %arg7[%c0_22, %c2, %c0_23, %c0_24] : memref<1x8x8x16xbf16, #tpu.memory_space<vmem>>, vector<1x1x8x16xbf16>
    %43 = vector.shape_cast %42 : vector<1x1x8x16xbf16> to vector<8x16xbf16>
    %44 = vector.shape_cast %41 : vector<8x16xbf16> to vector<1x1x8x16xbf16>
    tpu.vector_store %arg7[%c0_22, %c2, %c0_23, %c0_24], %44 {strides = array<i32>} : memref<1x8x8x16xbf16, #tpu.memory_space<vmem>>, vector<1x1x8x16xbf16>,
    %45 = vector.extract_strided_slice %32 {offsets = [0, 48], sizes = [8, 16], strides = [1, 1]} : vector<8x128xbf16> to vector<8x16xbf16>
    %c0_25 = arith.constant 0 : index
    %c3 = arith.constant 3 : index
    %c0_26 = arith.constant 0 : index
    %c0_27 = arith.constant 0 : index
    %46 = vector.load %arg7[%c0_25, %c3, %c0_26, %c0_27] : memref<1x8x8x16xbf16, #tpu.memory_space<vmem>>, vector<1x1x8x16xbf16>
    %47 = vector.shape_cast %46 : vector<1x1x8x16xbf16> to vector<8x16xbf16>
    %48 = vector.shape_cast %45 : vector<8x16xbf16> to vector<1x1x8x16xbf16>
    tpu.vector_store %arg7[%c0_25, %c3, %c0_26, %c0_27], %48 {strides = array<i32>} : memref<1x8x8x16xbf16, #tpu.memory_space<vmem>>, vector<1x1x8x16xbf16>,
    %49 = vector.extract_strided_slice %32 {offsets = [0, 64], sizes = [8, 16], strides = [1, 1]} : vector<8x128xbf16> to vector<8x16xbf16>
    %c0_28 = arith.constant 0 : index
    %c4 = arith.constant 4 : index
    %c0_29 = arith.constant 0 : index
    %c0_30 = arith.constant 0 : index
    %50 = vector.load %arg7[%c0_28, %c4, %c0_29, %c0_30] : memref<1x8x8x16xbf16, #tpu.memory_space<vmem>>, vector<1x1x8x16xbf16>
    %51 = vector.shape_cast %50 : vector<1x1x8x16xbf16> to vector<8x16xbf16>
    %52 = vector.shape_cast %49 : vector<8x16xbf16> to vector<1x1x8x16xbf16>
    tpu.vector_store %arg7[%c0_28, %c4, %c0_29, %c0_30], %52 {strides = array<i32>} : memref<1x8x8x16xbf16, #tpu.memory_space<vmem>>, vector<1x1x8x16xbf16>,
    %53 = vector.extract_strided_slice %32 {offsets = [0, 80], sizes = [8, 16], strides = [1, 1]} : vector<8x128xbf16> to vector<8x16xbf16>
    %c0_31 = arith.constant 0 : index
    %c5 = arith.constant 5 : index
    %c0_32 = arith.constant 0 : index
    %c0_33 = arith.constant 0 : index
    %54 = vector.load %arg7[%c0_31, %c5, %c0_32, %c0_33] : memref<1x8x8x16xbf16, #tpu.memory_space<vmem>>, vector<1x1x8x16xbf16>
    %55 = vector.shape_cast %54 : vector<1x1x8x16xbf16> to vector<8x16xbf16>
    %56 = vector.shape_cast %53 : vector<8x16xbf16> to vector<1x1x8x16xbf16>
    tpu.vector_store %arg7[%c0_31, %c5, %c0_32, %c0_33], %56 {strides = array<i32>} : memref<1x8x8x16xbf16, #tpu.memory_space<vmem>>, vector<1x1x8x16xbf16>,
    %57 = vector.extract_strided_slice %32 {offsets = [0, 96], sizes = [8, 16], strides = [1, 1]} : vector<8x128xbf16> to vector<8x16xbf16>
    %c0_34 = arith.constant 0 : index
    %c6 = arith.constant 6 : index
    %c0_35 = arith.constant 0 : index
    %c0_36 = arith.constant 0 : index
    %58 = vector.load %arg7[%c0_34, %c6, %c0_35, %c0_36] : memref<1x8x8x16xbf16, #tpu.memory_space<vmem>>, vector<1x1x8x16xbf16>
    %59 = vector.shape_cast %58 : vector<1x1x8x16xbf16> to vector<8x16xbf16>
    %60 = vector.shape_cast %57 : vector<8x16xbf16> to vector<1x1x8x16xbf16>
    tpu.vector_store %arg7[%c0_34, %c6, %c0_35, %c0_36], %60 {strides = array<i32>} : memref<1x8x8x16xbf16, #tpu.memory_space<vmem>>, vector<1x1x8x16xbf16>,
    %61 = vector.extract_strided_slice %32 {offsets = [0, 112], sizes = [8, 16], strides = [1, 1]} : vector<8x128xbf16> to vector<8x16xbf16>
    %c0_37 = arith.constant 0 : index
    %c7 = arith.constant 7 : index
    %c0_38 = arith.constant 0 : index
    %c0_39 = arith.constant 0 : index
    %62 = vector.load %arg7[%c0_37, %c7, %c0_38, %c0_39] : memref<1x8x8x16xbf16, #tpu.memory_space<vmem>>, vector<1x1x8x16xbf16>
    %63 = vector.shape_cast %62 : vector<1x1x8x16xbf16> to vector<8x16xbf16>
    %64 = vector.shape_cast %61 : vector<8x16xbf16> to vector<1x1x8x16xbf16>
    tpu.vector_store %arg7[%c0_37, %c7, %c0_38, %c0_39], %64 {strides = array<i32>} : memref<1x8x8x16xbf16, #tpu.memory_space<vmem>>, vector<1x1x8x16xbf16>,
    return
  }
  func.func @transform_0(%arg0: i32, %arg1: i32) -> (i32, i32, i32) {
    %c0_i32 = arith.constant 0 : i32
    %c0_i32_0 = arith.constant 0 : i32
    return %arg0, %arg1, %c0_i32 : i32, i32, i32
  }
  func.func @transform_1(%arg0: i32, %arg1: i32) -> (i32, i32) {
    %c0_i32 = arith.constant 0 : i32
    %c0_i32_0 = arith.constant 0 : i32
    %c0_i32_1 = arith.constant 0 : i32
    return %c0_i32, %c0_i32_0 : i32, i32
  }
  func.func @transform_2(%arg0: i32, %arg1: i32) -> (i32, i32) {
    %c0_i32 = arith.constant 0 : i32
    %c0_i32_0 = arith.constant 0 : i32
    %c0_i32_1 = arith.constant 0 : i32
    return %c0_i32, %c0_i32_0 : i32, i32
  }
  func.func @transform_3(%arg0: i32, %arg1: i32) -> (i32, i32) {
    %c0_i32 = arith.constant 0 : i32
    %c0_i32_0 = arith.constant 0 : i32
    %c0_i32_1 = arith.constant 0 : i32
    return %c0_i32, %c0_i32_0 : i32, i32
  }
  func.func @transform_4(%arg0: i32, %arg1: i32) -> (i32, i32) {
    %c0_i32 = arith.constant 0 : i32
    %c0_i32_0 = arith.constant 0 : i32
    %c0_i32_1 = arith.constant 0 : i32
    return %c0_i32, %c0_i32_0 : i32, i32
  }
  func.func @transform_5(%arg0: i32, %arg1: i32) -> (i32, i32, i32, i32) {
    %c0_i32 = arith.constant 0 : i32
    %c0_i32_0 = arith.constant 0 : i32
    %c0_i32_1 = arith.constant 0 : i32
    return %arg0, %c0_i32, %arg1, %c0_i32_0 : i32, i32, i32, i32
  }
}

</mosaic_0001>

<llo_original>
// kernel: tpu_custom_call.1
$region0: #{tpu_custom_call.1}
  #allocation0 [shape = 'u32[]', space=smem, size = 0x4, offset = 0x4, fixed_abs, tag = 'smem constant byte address 0x4 - core index']
  #allocation1 [shape = 'u32[144,128]{1,0:T(1,128)}', space=vmem, size = 0x12000, scoped, tag = 'internal scratch']
  %s0 = inlined_call_operand.hbm [shape: f32[2,8,128], index: 0, kind: input, shape index: {}]
  %s1 = inlined_call_operand.vmem [shape: f32[1,128], index: 1, kind: input, shape index: {}]
  %s2 = inlined_call_operand.vmem [shape: f32[1,128], index: 2, kind: input, shape index: {}]
  %s3 = inlined_call_operand.hbm [shape: bf16[128,128], index: 3, kind: input, shape index: {}]
  %s4 = inlined_call_operand.vmem [shape: f32[1,128], index: 4, kind: input, shape index: {}]
  %s5 = inlined_call_operand.hbm [shape: bf16[2,8,8,16], index: 5, kind: output, shape index: {}]
  %s6 = sld [smem:[#allocation0]]
  $region61: #{tpu_custom_call.1} parent=0
    _
  %s8 = ssub.s32 1, %s6
  %s9 = scalar_select 0, %s8, %s6
  $region1: #{tpu_custom_call.1} parent=0
    #allocation2 [shape = 'u8[8192]{0}', space=vmem, size = 0x2000, scoped, tag = 'input window, operand 0']
    #allocation3 [shape = 's32[2]{0}', space=sflag, size = 0x8, scoped, tag = 'scoped memory for tpu_custom_call.1']
    #allocation4 [shape = 's32[2]{0}', space=sflag, size = 0x8, scoped, tag = 'scoped memory for tpu_custom_call.1']
    #allocation5 [shape = 'u8[32768]{0}', space=vmem, size = 0x8000, scoped, tag = 'input window, operand 3, single buffered']
    #allocation6 [shape = 's32[1]{0}', space=sflag, size = 0x4, scoped, tag = 'scoped memory for tpu_custom_call.1']
    #allocation7 [shape = 'u8[32768]{0}', space=vmem, size = 0x8000, scoped, tag = 'output window, operand 0']
    %10 = vsyncpa [#allocation3], 0
    %s11 = scalar_lea.sflag [#allocation3], 1
    %12 = vsyncpa %s11, 0
    %13 = vsyncpa [#allocation6], 0
    %14 = vsyncpa [#allocation4], 0
    %s15 = scalar_lea.sflag [#allocation4], 1
    %16 = vsyncpa %s15, 0
    loop: start=0, step=1, limit=4
    $region2: #{tpu_custom_call.1} parent=1 // loop_pre_header
      _
    $region3: #{tpu_custom_call.1} parent=1 // loop_header
      %s18 = sphi 0, %s22
      %p19 = scmp.ge.s32.totalorder %s18, 4
      %s25 = sphi 0, %s37
      %s26 = sphi 0, %s33
      %s27 = sphi 0, %s25
      %s28 = sphi 0, %s26
      %s29 = sphi 0, %s27
      %s30 = sphi 0, %s28
      %s42 = sphi 0, %s44
      %s45 = sphi 0, %s42
      %s46 = sphi 0, %s45
      %s62 = sphi 0, %s46
      %s66 = sphi 0, %s66
      %s68 = sphi 0, %s66
      %s69 = sphi 0, %s68
      %s83 = sphi 0, %s69
      %s87 = sphi 0, %s87
      %s89 = sphi 0, %s87
      %s90 = sphi 0, %s89
      %s104 = sphi 0, %s90
      %s108 = sphi 0, %s108
      %s110 = sphi 0, %s108
      %s111 = sphi 0, %s110
      %s125 = sphi 0, %s111
      %s129 = sphi 0, %s129
      %s131 = sphi 0, %s129
      %s132 = sphi 0, %s131
      %s146 = sphi 0, %s132
      %s154 = sphi 0, %s156
      %s157 = sphi 0, %s154
      %s158 = sphi 0, %s157
      %s174 = sphi 0, %s158
    $region4: #{tpu_custom_call.1} parent=1 // loop_header_branch
      %21 = sbr.rel (%p19) target = $region8
    $region5: #{tpu_custom_call.1} parent=1 // loop_body
      %s23 = ssub.s32 %s18, 1
      %s24 = ssub.s32 %s18, 2
      %s31 = sadd.s32 1, %s26
      %p32 = scmp.ge.s32.totalorder %s31, 1
      %s33 = scalar_select %p32, 0, %s31
      %s34 = sadd.s32 1, %s25
      %s35 = scalar_select %p32, %s34, %s25
      %p36 = scmp.ge.s32.totalorder %s35, 2
      %s37 = scalar_select %p36, 0, %s35
      %s38 = ssub.s32 %s25, %s37
      %s39 = ssub.s32 %s26, %s33
      %s40 = sor.u32 %s38, %s39
      %p41 = scmp.eq.s32.totalorder %s40, 0
      %s43 = sadd.s32 %s42, 1
      %s44 = scalar_select %p41, %s42, %s43
      %p47 = pneg %p41
      %p48 = scmp.eq.s32.totalorder %s18, 1
      %p49 = por %p47, %p48
      %p50 = scmp.ne.s32.totalorder %s42, %s45
      %p51 = scmp.eq.s32.totalorder %s18, 0
      %p52 = por %p50, %p51
      %p53 = scmp.ne.s32.totalorder %s42, %s45
      %p54 = scmp.eq.s32.totalorder %s23, 1
      %p55 = por %p53, %p54
      %p56 = scmp.ne.s32.totalorder %s45, %s46
      %p57 = scmp.eq.s32.totalorder %s23, 0
      %p58 = por %p56, %p57
      %p59 = scmp.ne.s32.totalorder %s45, %s46
      %p60 = scmp.eq.s32.totalorder %s24, 1
      %p61 = por %p59, %p60
      %p63 = scmp.ne.s32.totalorder %s46, %s62
      %p64 = scmp.eq.s32.totalorder %s24, 0
      %p65 = por %p63, %p64
      %s67 = sadd.s32 %s66, 1
      %p70 = scmp.eq.s32.totalorder %s18, 1
      %p71 = scmp.ne.s32.totalorder %s66, %s68
      %p72 = scmp.eq.s32.totalorder %s18, 0
      %p73 = por %p71, %p72
      %p74 = scmp.ne.s32.totalorder %s66, %s68
      %p75 = scmp.eq.s32.totalorder %s23, 1
      %p76 = por %p74, %p75
      %p77 = scmp.ne.s32.totalorder %s68, %s69
      %p78 = scmp.eq.s32.totalorder %s23, 0
      %p79 = por %p77, %p78
      %p80 = scmp.ne.s32.totalorder %s68, %s69
      %p81 = scmp.eq.s32.totalorder %s24, 1
      %p82 = por %p80, %p81
      %p84 = scmp.ne.s32.totalorder %s69, %s83
      %p85 = scmp.eq.s32.totalorder %s24, 0
      %p86 = por %p84, %p85
      %s88 = sadd.s32 %s87, 1
      %p91 = scmp.eq.s32.totalorder %s18, 1
      %p92 = scmp.ne.s32.totalorder %s87, %s89
      %p93 = scmp.eq.s32.totalorder %s18, 0
      %p94 = por %p92, %p93
      %p95 = scmp.ne.s32.totalorder %s87, %s89
      %p96 = scmp.eq.s32.totalorder %s23, 1
      %p97 = por %p95, %p96
      %p98 = scmp.ne.s32.totalorder %s89, %s90
      %p99 = scmp.eq.s32.totalorder %s23, 0
      %p100 = por %p98, %p99
      %p101 = scmp.ne.s32.totalorder %s89, %s90
      %p102 = scmp.eq.s32.totalorder %s24, 1
      %p103 = por %p101, %p102
      %p105 = scmp.ne.s32.totalorder %s90, %s104
      %p106 = scmp.eq.s32.totalorder %s24, 0
      %p107 = por %p105, %p106
      %s109 = sadd.s32 %s108, 1
      %p112 = scmp.eq.s32.totalorder %s18, 1
      %p113 = scmp.ne.s32.totalorder %s108, %s110
      %p114 = scmp.eq.s32.totalorder %s18, 0
      %p115 = por %p113, %p114
      %p116 = scmp.ne.s32.totalorder %s108, %s110
      %p117 = scmp.eq.s32.totalorder %s23, 1
      %p118 = por %p116, %p117
      %p119 = scmp.ne.s32.totalorder %s110, %s111
      %p120 = scmp.eq.s32.totalorder %s23, 0
      %p121 = por %p119, %p120
      %p122 = scmp.ne.s32.totalorder %s110, %s111
      %p123 = scmp.eq.s32.totalorder %s24, 1
      %p124 = por %p122, %p123
      %p126 = scmp.ne.s32.totalorder %s111, %s125
      %p127 = scmp.eq.s32.totalorder %s24, 0
      %p128 = por %p126, %p127
      %s130 = sadd.s32 %s129, 1
      %p133 = scmp.eq.s32.totalorder %s18, 1
      %p134 = scmp.ne.s32.totalorder %s129, %s131
      %p135 = scmp.eq.s32.totalorder %s18, 0
      %p136 = por %p134, %p135
      %p137 = scmp.ne.s32.totalorder %s129, %s131
      %p138 = scmp.eq.s32.totalorder %s23, 1
      %p139 = por %p137, %p138
      %p140 = scmp.ne.s32.totalorder %s131, %s132
      %p141 = scmp.eq.s32.totalorder %s23, 0
      %p142 = por %p140, %p141
      %p143 = scmp.ne.s32.totalorder %s131, %s132
      %p144 = scmp.eq.s32.totalorder %s24, 1
      %p145 = por %p143, %p144
      %p147 = scmp.ne.s32.totalorder %s132, %s146
      %p148 = scmp.eq.s32.totalorder %s24, 0
      %p149 = por %p147, %p148
      %s150 = ssub.s32 %s25, %s37
      %s151 = ssub.s32 %s26, %s33
      %s152 = sor.u32 %s150, %s151
      %p153 = scmp.eq.s32.totalorder %s152, 0
      %s155 = sadd.s32 %s154, 1
      %s156 = scalar_select %p153, %s154, %s155
      %p159 = pneg %p153
      %p160 = scmp.eq.s32.totalorder %s18, 1
      %p161 = por %p159, %p160
      %p162 = scmp.ne.s32.totalorder %s154, %s157
      %p163 = scmp.eq.s32.totalorder %s18, 0
      %p164 = por %p162, %p163
      %p165 = scmp.ne.s32.totalorder %s154, %s157
      %p166 = scmp.eq.s32.totalorder %s23, 1
      %p167 = por %p165, %p166
      %p168 = scmp.ne.s32.totalorder %s157, %s158
      %p169 = scmp.eq.s32.totalorder %s23, 0
      %p170 = por %p168, %p169
      %p171 = scmp.ne.s32.totalorder %s157, %s158
      %p172 = scmp.eq.s32.totalorder %s24, 1
      %p173 = por %p171, %p172
      %p175 = scmp.ne.s32.totalorder %s158, %s174
      %p176 = scmp.eq.s32.totalorder %s24, 0
      %p177 = por %p175, %p176
      %p178 = scmp.le.s32.totalorder 1, %s18
      %p179 = scmp.lt.s32.totalorder %s18, 3
      %p180 = pnand %p178, %p179
      %p181 = pneg %p180
      // Predicated region
      $region9: #{tpu_custom_call.1} parent=5 // pred_check
        _
      $region10: #{tpu_custom_call.1} parent=5 // pred_check_branch
        %183 = sbr.rel (%p180) target = $region12
      $region11: #{tpu_custom_call.1} parent=5 // pred_region
        %s184 = ssub.s32 %s18, 1
        // Predicated region
        $region13: #{tpu_custom_call.1} parent=11 // pred_check
          %p185 = pneg %p79
        $region14: #{tpu_custom_call.1} parent=11 // pred_check_branch
          %187 = sbr.rel (%p185) target = $region16
        $region15: #{tpu_custom_call.1} parent=11 // pred_region
          _
        $region16: #{tpu_custom_call.1} parent=11 // pred_fallthru
          _
        // Predicated region
        $region17: #{tpu_custom_call.1} parent=11 // pred_check
          %p188 = pneg %p100
        $region18: #{tpu_custom_call.1} parent=11 // pred_check_branch
          %190 = sbr.rel (%p188) target = $region20
        $region19: #{tpu_custom_call.1} parent=11 // pred_region
          _
        $region20: #{tpu_custom_call.1} parent=11 // pred_fallthru
          _
        // Predicated region
        $region21: #{tpu_custom_call.1} parent=11 // pred_check
          %p191 = pneg %p121
        $region22: #{tpu_custom_call.1} parent=11 // pred_check_branch
          %193 = sbr.rel (%p191) target = $region24
        $region23: #{tpu_custom_call.1} parent=11 // pred_region
          %s195 = ssub.s32 1024, 1024
          %196 = vsyncadd [#allocation6], %s195
          %s197 = sshll.u32 [#allocation5], 4
          %s198 = int_to_ptr.vmem [resolvable:$true] %s197
          %203 = dma.hbm_to_vmem [thread:$0]  %s3, 1024, %s198, [#allocation6], 64, 64, 4
        $region24: #{tpu_custom_call.1} parent=11 // pred_fallthru
          _
        // Predicated region
        $region25: #{tpu_custom_call.1} parent=11 // pred_check
          %p204 = pneg %p142
        $region26: #{tpu_custom_call.1} parent=11 // pred_check_branch
          %206 = sbr.rel (%p204) target = $region28
        $region27: #{tpu_custom_call.1} parent=11 // pred_region
          _
        $region28: #{tpu_custom_call.1} parent=11 // pred_fallthru
          _
      $region12: #{tpu_custom_call.1} parent=5 // pred_fallthru
        _
      %p207 = scmp.lt.s32.totalorder %s18, 2
      // Predicated region
      $region29: #{tpu_custom_call.1} parent=5 // pred_check
        %p208 = pneg %p207
      $region30: #{tpu_custom_call.1} parent=5 // pred_check_branch
        %210 = sbr.rel (%p208) target = $region32
      $region31: #{tpu_custom_call.1} parent=5 // pred_region
        // Predicated region
        $region33: #{tpu_custom_call.1} parent=31 // pred_check
          %p211 = pneg %p52
        $region34: #{tpu_custom_call.1} parent=31 // pred_check_branch
          %213 = sbr.rel (%p211) target = $region36
        $region35: #{tpu_custom_call.1} parent=31 // pred_region
          %s214 = sand.u32 %s42, 1
          %s215 = scalar_lea.sflag [#allocation3], %s214
          %s216 = sand.u32 %s42, 1
          %s217 = smul.addr %s216, 8
          %s218 = scalar_lea.vmem [#allocation2], %s217
          %s220 = ssub.s32 128, 128
          %221 = vsyncadd %s215, %s220
          %s222 = sadd.s32 %s26, %s25
          %s223 = smul.addr %s222, 128
          %s224 = scalar_lea.hbm %s0, %s223
          %s226 = sshll.u32 %s218, 4
          %s227 = int_to_ptr.vmem [resolvable:$true] %s226
          %229 = dma.hbm_to_vmem [thread:$0]  %s224, 128, %s227, %s215
        $region36: #{tpu_custom_call.1} parent=31 // pred_fallthru
          _
      $region32: #{tpu_custom_call.1} parent=5 // pred_fallthru
        _
      %p230 = scmp.le.s32.totalorder 1, %s18
      %p231 = scmp.lt.s32.totalorder %s18, 3
      %p232 = pnand %p230, %p231
      %p233 = pneg %p232
      // Predicated region
      $region37: #{tpu_custom_call.1} parent=5 // pred_check
        _
      $region38: #{tpu_custom_call.1} parent=5 // pred_check_branch
        %235 = sbr.rel (%p232) target = $region40
      $region39: #{tpu_custom_call.1} parent=5 // pred_region
        %s236 = ssub.s32 %s18, 1
        %s237 = sand.u32 %s45, 1
        %s238 = scalar_lea.sflag [#allocation3], %s237
        %s239 = sand.u32 %s45, 1
        %s240 = smul.addr %s239, 8
        %s241 = scalar_lea.vmem [#allocation2], %s240
        // Predicated region
        $region41: #{tpu_custom_call.1} parent=39 // pred_check
          %p242 = pneg %p58
        $region42: #{tpu_custom_call.1} parent=39 // pred_check_branch
          %244 = sbr.rel (%p242) target = $region44
        $region43: #{tpu_custom_call.1} parent=39 // pred_region
          %245 = dma.done %s238, 128
        $region44: #{tpu_custom_call.1} parent=39 // pred_fallthru
          _
        // Predicated region
        $region45: #{tpu_custom_call.1} parent=39 // pred_check
          %p246 = pneg %p121
        $region46: #{tpu_custom_call.1} parent=39 // pred_check_branch
          %248 = sbr.rel (%p246) target = $region48
        $region47: #{tpu_custom_call.1} parent=39 // pred_region
          %249 = dma.done [#allocation6], 1024
        $region48: #{tpu_custom_call.1} parent=39 // pred_fallthru
          _
        %s250 = sand.u32 %s45, 1
        %s251 = scalar_lea.sflag [#allocation3], %s250
        %s252 = sand.u32 %s45, 1
        %s253 = smul.addr %s252, 8
        %s254 = scalar_lea.vmem [#allocation2], %s253
        %p255 = pneg %p58
        %p256 = pneg %p55
        %p257 = pneg %p79
        %p258 = pneg %p76
        %p259 = pneg %p100
        %p260 = pneg %p97
        %p261 = pneg %p121
        %p262 = pneg %p118
        %p263 = pneg %p142
        %p264 = pneg %p139
        %p265 = pneg %p170
        %p266 = pneg %p167
        %s267 = sand.u32 %s157, 1
        %s268 = scalar_lea.sflag [#allocation4], %s267
        %s269 = sand.u32 %s157, 1
        %s270 = smul.addr %s269, 32
        %s271 = scalar_lea.vmem [#allocation7], %s270
        %v273 = vld [vmem:[%s241] sm:$0xff]
        %v274 = vld [vmem:[%s1] sm:$0x1]
        %v275 = vld [vmem:[%s2] sm:$0x1]
        %276 = vadd.xlane.f32.xlu0 %v273
        %v277 = vpop.xlane.xlu0 %276
        %v278 = vrcp.pop 128.0
        %v279 = vmul.f32 %v277, %v278
        %v280 = vsub.f32 %v273, %v279
        %v281 = vmul.f32 %v280, %v280
        %282 = vadd.xlane.f32.xlu0 %v281
        %v283 = vpop.xlane.xlu0 %282
        %v284 = vmul.f32 %v283, %v278
        %v285 = vadd.f32 %v284, 1e-05
        %v286 = vrsqrt.pop %v285
        %v287 = vmul.f32 %v280, %v286
        %v289 = vlaneseq
        %v290 = vshrl.u32 %v289, 7
        %v291 = vsub.s32 0, %v290
        %v292 = vrot.slane %v274, %v291
        %v294 = vmul.f32 %v287, %v292
        %v296 = vlaneseq
        %v297 = vshrl.u32 %v296, 7
        %v298 = vsub.s32 0, %v297
        %v299 = vrot.slane %v275, %v298
        %v301 = vadd.f32 %v294, %v299
        %v302 = vpack.c.bf16 %v301, %v301
        %v303 = vld [vmem:[#allocation5] sm:$0xf]
        %v304 = vld [vmem:[#allocation5 + $0x4] sm:$0xf]
        %v305 = vld [vmem:[#allocation5 + $0x8] sm:$0xf]
        %v306 = vld [vmem:[#allocation5 + $0xc] sm:$0xf]
        %v307 = vld [vmem:[#allocation5 + $0x10] sm:$0xf]
        %v308 = vld [vmem:[#allocation5 + $0x14] sm:$0xf]
        %v309 = vld [vmem:[#allocation5 + $0x18] sm:$0xf]
        %v310 = vld [vmem:[#allocation5 + $0x1c] sm:$0xf]
        %v311 = vld [vmem:[#allocation5 + $0x20] sm:$0xf]
        %v312 = vld [vmem:[#allocation5 + $0x24] sm:$0xf]
        %v313 = vld [vmem:[#allocation5 + $0x28] sm:$0xf]
        %v314 = vld [vmem:[#allocation5 + $0x2c] sm:$0xf]
        %v315 = vld [vmem:[#allocation5 + $0x30] sm:$0xf]
        %v316 = vld [vmem:[#allocation5 + $0x34] sm:$0xf]
        %v317 = vld [vmem:[#allocation5 + $0x38] sm:$0xf]
        %v318 = vld [vmem:[#allocation5 + $0x3c] sm:$0xf]
        %v319 = vld [vmem:[%s4] sm:$0x1]
        %v321 = vlaneseq
        %v322 = vshrl.u32 %v321, 7
        %v323 = vsub.s32 0, %v322
        %v324 = vrot.slane %v319, %v323
        %v342 = vunpack.c.l.b16 %v303
        %v343 = vunpack.c.l.b16 %v304
        %v344 = vunpack.c.l.b16 %v305
        %v345 = vunpack.c.l.b16 %v306
        %v346 = vunpack.c.l.b16 %v307
        %v347 = vunpack.c.l.b16 %v308
        %v348 = vunpack.c.l.b16 %v309
        %v349 = vunpack.c.l.b16 %v310
        %v350 = vunpack.c.l.b16 %v311
        %v351 = vunpack.c.l.b16 %v312
        %v352 = vunpack.c.l.b16 %v313
        %v353 = vunpack.c.l.b16 %v314
        %v354 = vunpack.c.l.b16 %v315
        %v355 = vunpack.c.l.b16 %v316
        %v356 = vunpack.c.l.b16 %v317
        %v357 = vunpack.c.l.b16 %v318
        %v358 = vpack.c.b16 %v343, %v342
        %v359 = vpack.c.b16 %v345, %v344
        %v360 = vpack.c.b16 %v347, %v346
        %v361 = vpack.c.b16 %v349, %v348
        %v362 = vpack.c.b16 %v351, %v350
        %v363 = vpack.c.b16 %v353, %v352
        %v364 = vpack.c.b16 %v355, %v354
        %v365 = vpack.c.b16 %v357, %v356
        %374 = vmatprep.subr.bf16.mxu0 0
        %375 = vmatpush1.bf16.msra.mxu0 %v358
        %376 = vmatprep.subr.bf16.mxu0 0
        %377 = vmatpush1.bf16.msra.mxu0 %v359
        %378 = vmatprep.subr.bf16.mxu0 0
        %379 = vmatpush1.bf16.msra.mxu0 %v360
        %380 = vmatprep.subr.bf16.mxu0 0
        %381 = vmatpush1.bf16.msra.mxu0 %v361
        %382 = vmatprep.subr.bf16.mxu0 0
        %383 = vmatpush1.bf16.msra.mxu0 %v362
        %384 = vmatprep.subr.bf16.mxu0 0
        %385 = vmatpush1.bf16.msra.mxu0 %v363
        %386 = vmatprep.subr.bf16.mxu0 0
        %387 = vmatpush1.bf16.msra.mxu0 %v364
        %388 = vmatprep.subr.bf16.mxu0 0
        %389 = vmatpush1.bf16.msra.mxu0 %v365
        %390 = vmatprep.subr.bf16.mxu0 0
        %391 = vmatpush1.bf16.msra.mxu0 0
        %392 = vmatprep.subr.bf16.mxu0 0
        %393 = vmatpush1.bf16.msra.mxu0 0
        %394 = vmatprep.subr.bf16.mxu0 0
        %395 = vmatpush1.bf16.msra.mxu0 0
        %396 = vmatprep.subr.bf16.mxu0 0
        %397 = vmatpush1.bf16.msra.mxu0 0
        %398 = vmatprep.subr.bf16.mxu0 0
        %399 = vmatpush1.bf16.msra.mxu0 0
        %400 = vmatprep.subr.bf16.mxu0 0
        %401 = vmatpush1.bf16.msra.mxu0 0
        %402 = vmatprep.subr.bf16.mxu0 0
        %403 = vmatpush1.bf16.msra.mxu0 0
        %404 = vmatprep.subr.bf16.mxu0 0
        %405 = vmatpush1.bf16.msra.mxu0 0
        %406 = vmatprep.mubr.bf16.mxu0 0
        %407 = vmatmul.mubr.bf16.gmra.mrb[0].mxu0 %v302
        %v408 = vpop.f32.mrb[0].mxu0
        %v409 = vadd.f32 %v324, %v408
        %v410 = vpop.f32.mrb[0].mxu0
        %v411 = vpop.f32.mrb[0].mxu0
        %v412 = vpop.f32.mrb[0].mxu0
        %413 = vdwg.mxu0
        %v414 = vpack.c.bf16 %v409, %v409
        %vm415 = vcmask 125952
        %416 = vst.msk [vmem:[%s271] sm:$0xf] %vm415, %v414
        %v418 = vunpack.c.l.b16 %v414
        %v419 = vpack.c.b16 %v418, %v418
        %420 = vrot.lane.b32.xlu0 %v419, 112
        %v421 = vpop.permute.xlu0 %420
        %s423 = scalar_lea.vmem %s271, 4 [#allocation7]
        %424 = vst.msk [vmem:[%s423] sm:$0xf] %vm415, %v421
        %425 = vrot.lane.b32.xlu0 %v419, 96
        %v426 = vpop.permute.xlu0 %425
        %s428 = scalar_lea.vmem %s271, 8 [#allocation7]
        %429 = vst.msk [vmem:[%s428] sm:$0xf] %vm415, %v426
        %430 = vrot.lane.b32.xlu0 %v419, 80
        %v431 = vpop.permute.xlu0 %430
        %s433 = scalar_lea.vmem %s271, 12 [#allocation7]
        %434 = vst.msk [vmem:[%s433] sm:$0xf] %vm415, %v431
        %435 = vrot.lane.b32.xlu0 %v419, 64
        %v436 = vpop.permute.xlu0 %435
        %s438 = scalar_lea.vmem %s271, 16 [#allocation7]
        %439 = vst.msk [vmem:[%s438] sm:$0xf] %vm415, %v436
        %440 = vrot.lane.b32.xlu0 %v419, 48
        %v441 = vpop.permute.xlu0 %440
        %s443 = scalar_lea.vmem %s271, 20 [#allocation7]
        %444 = vst.msk [vmem:[%s443] sm:$0xf] %vm415, %v441
        %445 = vrot.lane.b32.xlu0 %v419, 32
        %v446 = vpop.permute.xlu0 %445
        %s448 = scalar_lea.vmem %s271, 24 [#allocation7]
        %449 = vst.msk [vmem:[%s448] sm:$0xf] %vm415, %v446
        %450 = vrot.lane.b32.xlu0 %v419, 16
        %v451 = vpop.permute.xlu0 %450
        %s453 = scalar_lea.vmem %s271, 28 [#allocation7]
        %454 = vst.msk [vmem:[%s453] sm:$0xf] %vm415, %v451
        %s455 = sand.u32 %s157, 1
        %s456 = scalar_lea.sflag [#allocation4], %s455
        %s457 = sand.u32 %s157, 1
        %s458 = smul.addr %s457, 32
        %s459 = scalar_lea.vmem [#allocation7], %s458
        // Predicated region
        $region49: #{tpu_custom_call.1} parent=39 // pred_check
          %p460 = pneg %p167
        $region50: #{tpu_custom_call.1} parent=39 // pred_check_branch
          %462 = sbr.rel (%p460) target = $region52
        $region51: #{tpu_custom_call.1} parent=39 // pred_region
          %s464 = ssub.s32 512, 512
          %465 = vsyncadd %s456, %s464
          %s466 = smul.addr %s27, 8
          %s467 = sadd.s32 %s28, %s466
          %s468 = smul.addr %s467, 64
          %s469 = scalar_lea.hbm %s5, %s468
          %s470 = sshll.u32 %s459, 4
          %s471 = int_to_ptr.vmem [resolvable:$true] %s470
          %476 = dma.vmem_to_hbm [thread:$0]  %s471, 512, %s469, %s456, 64, 64, 4
        $region52: #{tpu_custom_call.1} parent=39 // pred_fallthru
          _
      $region40: #{tpu_custom_call.1} parent=5 // pred_fallthru
        _
      %p477 = scmp.le.s32.totalorder 2, %s18
      // Predicated region
      $region53: #{tpu_custom_call.1} parent=5 // pred_check
        %p478 = pneg %p477
      $region54: #{tpu_custom_call.1} parent=5 // pred_check_branch
        %480 = sbr.rel (%p478) target = $region56
      $region55: #{tpu_custom_call.1} parent=5 // pred_region
        %s481 = ssub.s32 %s18, 2
        // Predicated region
        $region57: #{tpu_custom_call.1} parent=55 // pred_check
          %p482 = pneg %p173
        $region58: #{tpu_custom_call.1} parent=55 // pred_check_branch
          %484 = sbr.rel (%p482) target = $region60
        $region59: #{tpu_custom_call.1} parent=55 // pred_region
          %s485 = sand.u32 %s158, 1
          %s486 = scalar_lea.sflag [#allocation4], %s485
          %s487 = sand.u32 %s158, 1
          %s488 = smul.addr %s487, 32
          %s489 = scalar_lea.vmem [#allocation7], %s488
          %490 = dma.done %s486, 512
        $region60: #{tpu_custom_call.1} parent=55 // pred_fallthru
          _
      $region56: #{tpu_custom_call.1} parent=5 // pred_fallthru
        _
    $region6: #{tpu_custom_call.1} parent=1 // loop_footer
      %s22 = sadd.s32 1, %s18
    $region7: #{tpu_custom_call.1} parent=1 // loop_footer_branch
      %17 = sbr.rel target = $region3
    $region8: #{tpu_custom_call.1} parent=1 // loop_exit
      _
    %491 = vsyncpa [#allocation3], 1
    %s492 = scalar_lea.sflag [#allocation3], 1
    %493 = vsyncpa %s492, 1
    %494 = vsyncpa [#allocation6], 1
    %495 = vsyncpa [#allocation4], 1
    %s496 = scalar_lea.sflag [#allocation4], 1
    %497 = vsyncpa %s496, 1

// kernel: tpu_custom_call.1
$region0: #{tpu_custom_call.1}
  #allocation0 [shape = 'u32[]', space=smem, size = 0x4, offset = 0x4, fixed_abs, tag = 'smem constant byte address 0x4 - core index']
  #allocation1 [shape = 'u32[144,128]{1,0:T(1,128)}', space=vmem, size = 0x12000, scoped, tag = 'internal scratch']
  %s0 = inlined_call_operand.hbm [shape: f32[2,8,128], index: 0, kind: input, shape index: {}]
  %s1 = inlined_call_operand.vmem [shape: f32[1,128], index: 1, kind: input, shape index: {}]
  %s2 = inlined_call_operand.vmem [shape: f32[1,128], index: 2, kind: input, shape index: {}]
  %s3 = inlined_call_operand.hbm [shape: bf16[128,128], index: 3, kind: input, shape index: {}]
  %s4 = inlined_call_operand.vmem [shape: f32[1,128], index: 4, kind: input, shape index: {}]
  %s5 = inlined_call_operand.hbm [shape: bf16[2,8,8,16], index: 5, kind: output, shape index: {}]
  %s6 = sld [smem:[#allocation0]]
  $region61: #{tpu_custom_call.1} parent=0
    _
  %s8 = ssub.s32 1, %s6
  %s9 = scalar_select 0, %s8, %s6
  $region1: #{tpu_custom_call.1} parent=0
    #allocation2 [shape = 'u8[8192]{0}', space=vmem, size = 0x2000, scoped, tag = 'input window, operand 0']
    #allocation3 [shape = 's32[2]{0}', space=sflag, size = 0x8, scoped, tag = 'scoped memory for tpu_custom_call.1']
    #allocation4 [shape = 's32[2]{0}', space=sflag, size = 0x8, scoped, tag = 'scoped memory for tpu_custom_call.1']
    #allocation5 [shape = 'u8[32768]{0}', space=vmem, size = 0x8000, scoped, tag = 'input window, operand 3, single buffered']
    #allocation6 [shape = 's32[1]{0}', space=sflag, size = 0x4, scoped, tag = 'scoped memory for tpu_custom_call.1']
    #allocation7 [shape = 'u8[32768]{0}', space=vmem, size = 0x8000, scoped, tag = 'output window, operand 0']
    %10 = vsyncpa [#allocation3], 0
    %s11 = scalar_lea.sflag [#allocation3], 1
    %12 = vsyncpa %s11, 0
    %13 = vsyncpa [#allocation6], 0
    %14 = vsyncpa [#allocation4], 0
    %s15 = scalar_lea.sflag [#allocation4], 1
    %16 = vsyncpa %s15, 0
    loop: start=0, step=1, limit=4
    $region2: #{tpu_custom_call.1} parent=1 // loop_pre_header
      _
    $region3: #{tpu_custom_call.1} parent=1 // loop_header
      %s18 = sphi 0, %s22
      %p19 = scmp.ge.s32.totalorder %s18, 4
      %s25 = sphi 0, %s37
      %s26 = sphi 0, %s33
      %s27 = sphi 0, %s25
      %s28 = sphi 0, %s26
      %s29 = sphi 0, %s27
      %s30 = sphi 0, %s28
      %s42 = sphi 0, %s44
      %s45 = sphi 0, %s42
      %s46 = sphi 0, %s45
      %s62 = sphi 0, %s46
      %s66 = sphi 0, %s66
      %s68 = sphi 0, %s66
      %s69 = sphi 0, %s68
      %s83 = sphi 0, %s69
      %s87 = sphi 0, %s87
      %s89 = sphi 0, %s87
      %s90 = sphi 0, %s89
      %s104 = sphi 0, %s90
      %s108 = sphi 0, %s108
      %s110 = sphi 0, %s108
      %s111 = sphi 0, %s110
      %s125 = sphi 0, %s111
      %s129 = sphi 0, %s129
      %s131 = sphi 0, %s129
      %s132 = sphi 0, %s131
      %s146 = sphi 0, %s132
      %s154 = sphi 0, %s156
      %s157 = sphi 0, %s154
      %s158 = sphi 0, %s157
      %s174 = sphi 0, %s158
    $region4: #{tpu_custom_call.1} parent=1 // loop_header_branch
      %21 = sbr.rel (%p19) target = $region8
    $region5: #{tpu_custom_call.1} parent=1 // loop_body
      %s23 = ssub.s32 %s18, 1
      %s24 = ssub.s32 %s18, 2
      %s31 = sadd.s32 1, %s26
      %p32 = scmp.ge.s32.totalorder %s31, 1
      %s33 = scalar_select %p32, 0, %s31
      %s34 = sadd.s32 1, %s25
      %s35 = scalar_select %p32, %s34, %s25
      %p36 = scmp.ge.s32.totalorder %s35, 2
      %s37 = scalar_select %p36, 0, %s35
      %s38 = ssub.s32 %s25, %s37
      %s39 = ssub.s32 %s26, %s33
      %s40 = sor.u32 %s38, %s39
      %p41 = scmp.eq.s32.totalorder %s40, 0
      %s43 = sadd.s32 %s42, 1
      %s44 = scalar_select %p41, %s42, %s43
      %p47 = pneg %p41
      %p48 = scmp.eq.s32.totalorder %s18, 1
      %p49 = por %p47, %p48
      %p50 = scmp.ne.s32.totalorder %s42, %s45
      %p51 = scmp.eq.s32.totalorder %s18, 0
      %p52 = por %p50, %p51
      %p53 = scmp.ne.s32.totalorder %s42, %s45
      %p54 = scmp.eq.s32.totalorder %s23, 1
      %p55 = por %p53, %p54
      %p56 = scmp.ne.s32.totalorder %s45, %s46
      %p57 = scmp.eq.s32.totalorder %s23, 0
      %p58 = por %p56, %p57
      %p59 = scmp.ne.s32.totalorder %s45, %s46
      %p60 = scmp.eq.s32.totalorder %s24, 1
      %p61 = por %p59, %p60
      %p63 = scmp.ne.s32.totalorder %s46, %s62
      %p64 = scmp.eq.s32.totalorder %s24, 0
      %p65 = por %p63, %p64
      %s67 = sadd.s32 %s66, 1
      %p70 = scmp.eq.s32.totalorder %s18, 1
      %p71 = scmp.ne.s32.totalorder %s66, %s68
      %p72 = scmp.eq.s32.totalorder %s18, 0
      %p73 = por %p71, %p72
      %p74 = scmp.ne.s32.totalorder %s66, %s68
      %p75 = scmp.eq.s32.totalorder %s23, 1
      %p76 = por %p74, %p75
      %p77 = scmp.ne.s32.totalorder %s68, %s69
      %p78 = scmp.eq.s32.totalorder %s23, 0
      %p79 = por %p77, %p78
      %p80 = scmp.ne.s32.totalorder %s68, %s69
      %p81 = scmp.eq.s32.totalorder %s24, 1
      %p82 = por %p80, %p81
      %p84 = scmp.ne.s32.totalorder %s69, %s83
      %p85 = scmp.eq.s32.totalorder %s24, 0
      %p86 = por %p84, %p85
      %s88 = sadd.s32 %s87, 1
      %p91 = scmp.eq.s32.totalorder %s18, 1
      %p92 = scmp.ne.s32.totalorder %s87, %s89
      %p93 = scmp.eq.s32.totalorder %s18, 0
      %p94 = por %p92, %p93
      %p95 = scmp.ne.s32.totalorder %s87, %s89
      %p96 = scmp.eq.s32.totalorder %s23, 1
      %p97 = por %p95, %p96
      %p98 = scmp.ne.s32.totalorder %s89, %s90
      %p99 = scmp.eq.s32.totalorder %s23, 0
      %p100 = por %p98, %p99
      %p101 = scmp.ne.s32.totalorder %s89, %s90
      %p102 = scmp.eq.s32.totalorder %s24, 1
      %p103 = por %p101, %p102
      %p105 = scmp.ne.s32.totalorder %s90, %s104
      %p106 = scmp.eq.s32.totalorder %s24, 0
      %p107 = por %p105, %p106
      %s109 = sadd.s32 %s108, 1
      %p112 = scmp.eq.s32.totalorder %s18, 1
      %p113 = scmp.ne.s32.totalorder %s108, %s110
      %p114 = scmp.eq.s32.totalorder %s18, 0
      %p115 = por %p113, %p114
      %p116 = scmp.ne.s32.totalorder %s108, %s110
      %p117 = scmp.eq.s32.totalorder %s23, 1
      %p118 = por %p116, %p117
      %p119 = scmp.ne.s32.totalorder %s110, %s111
      %p120 = scmp.eq.s32.totalorder %s23, 0
      %p121 = por %p119, %p120
      %p122 = scmp.ne.s32.totalorder %s110, %s111
      %p123 = scmp.eq.s32.totalorder %s24, 1
      %p124 = por %p122, %p123
      %p126 = scmp.ne.s32.totalorder %s111, %s125
      %p127 = scmp.eq.s32.totalorder %s24, 0
      %p128 = por %p126, %p127
      %s130 = sadd.s32 %s129, 1
      %p133 = scmp.eq.s32.totalorder %s18, 1
      %p134 = scmp.ne.s32.totalorder %s129, %s131
      %p135 = scmp.eq.s32.totalorder %s18, 0
      %p136 = por %p134, %p135
      %p137 = scmp.ne.s32.totalorder %s129, %s131
      %p138 = scmp.eq.s32.totalorder %s23, 1
      %p139 = por %p137, %p138
      %p140 = scmp.ne.s32.totalorder %s131, %s132
      %p141 = scmp.eq.s32.totalorder %s23, 0
      %p142 = por %p140, %p141
      %p143 = scmp.ne.s32.totalorder %s131, %s132
      %p144 = scmp.eq.s32.totalorder %s24, 1
      %p145 = por %p143, %p144
      %p147 = scmp.ne.s32.totalorder %s132, %s146
      %p148 = scmp.eq.s32.totalorder %s24, 0
      %p149 = por %p147, %p148
      %s150 = ssub.s32 %s25, %s37
      %s151 = ssub.s32 %s26, %s33
      %s152 = sor.u32 %s150, %s151
      %p153 = scmp.eq.s32.totalorder %s152, 0
      %s155 = sadd.s32 %s154, 1
      %s156 = scalar_select %p153, %s154, %s155
      %p159 = pneg %p153
      %p160 = scmp.eq.s32.totalorder %s18, 1
      %p161 = por %p159, %p160
      %p162 = scmp.ne.s32.totalorder %s154, %s157
      %p163 = scmp.eq.s32.totalorder %s18, 0
      %p164 = por %p162, %p163
      %p165 = scmp.ne.s32.totalorder %s154, %s157
      %p166 = scmp.eq.s32.totalorder %s23, 1
      %p167 = por %p165, %p166
      %p168 = scmp.ne.s32.totalorder %s157, %s158
      %p169 = scmp.eq.s32.totalorder %s23, 0
      %p170 = por %p168, %p169
      %p171 = scmp.ne.s32.totalorder %s157, %s158
      %p172 = scmp.eq.s32.totalorder %s24, 1
      %p173 = por %p171, %p172
      %p175 = scmp.ne.s32.totalorder %s158, %s174
      %p176 = scmp.eq.s32.totalorder %s24, 0
      %p177 = por %p175, %p176
      %p178 = scmp.le.s32.totalorder 1, %s18
      %p179 = scmp.lt.s32.totalorder %s18, 3
      %p180 = pnand %p178, %p179
      %p181 = pneg %p180
      // Predicated region
      $region9: #{tpu_custom_call.1} parent=5 // pred_check
        _
      $region10: #{tpu_custom_call.1} parent=5 // pred_check_branch
        %183 = sbr.rel (%p180) target = $region12
      $region11: #{tpu_custom_call.1} parent=5 // pred_region
        %s184 = ssub.s32 %s18, 1
        // Predicated region
        $region13: #{tpu_custom_call.1} parent=11 // pred_check
          %p185 = pneg %p79
        $region14: #{tpu_custom_call.1} parent=11 // pred_check_branch
          %187 = sbr.rel (%p185) target = $region16
        $region15: #{tpu_custom_call.1} parent=11 // pred_region
          _
        $region16: #{tpu_custom_call.1} parent=11 // pred_fallthru
          _
        // Predicated region
        $region17: #{tpu_custom_call.1} parent=11 // pred_check
          %p188 = pneg %p100
        $region18: #{tpu_custom_call.1} parent=11 // pred_check_branch
          %190 = sbr.rel (%p188) target = $region20
        $region19: #{tpu_custom_call.1} parent=11 // pred_region
          _
        $region20: #{tpu_custom_call.1} parent=11 // pred_fallthru
          _
        // Predicated region
        $region21: #{tpu_custom_call.1} parent=11 // pred_check
          %p191 = pneg %p121
        $region22: #{tpu_custom_call.1} parent=11 // pred_check_branch
          %193 = sbr.rel (%p191) target = $region24
        $region23: #{tpu_custom_call.1} parent=11 // pred_region
          %s195 = ssub.s32 1024, 1024
          %196 = vsyncadd [#allocation6], %s195
          %s197 = sshll.u32 [#allocation5], 4
          %s198 = int_to_ptr.vmem [resolvable:$true] %s197
          %203 = dma.hbm_to_vmem [thread:$0]  %s3, 1024, %s198, [#allocation6], 64, 64, 4
        $region24: #{tpu_custom_call.1} parent=11 // pred_fallthru
          _
        // Predicated region
        $region25: #{tpu_custom_call.1} parent=11 // pred_check
          %p204 = pneg %p142
        $region26: #{tpu_custom_call.1} parent=11 // pred_check_branch
          %206 = sbr.rel (%p204) target = $region28
        $region27: #{tpu_custom_call.1} parent=11 // pred_region
          _
        $region28: #{tpu_custom_call.1} parent=11 // pred_fallthru
          _
      $region12: #{tpu_custom_call.1} parent=5 // pred_fallthru
        _
      %p207 = scmp.lt.s32.totalorder %s18, 2
      // Predicated region
      $region29: #{tpu_custom_call.1} parent=5 // pred_check
        %p208 = pneg %p207
      $region30: #{tpu_custom_call.1} parent=5 // pred_check_branch
        %210 = sbr.rel (%p208) target = $region32
      $region31: #{tpu_custom_call.1} parent=5 // pred_region
        // Predicated region
        $region33: #{tpu_custom_call.1} parent=31 // pred_check
          %p211 = pneg %p52
        $region34: #{tpu_custom_call.1} parent=31 // pred_check_branch
          %213 = sbr.rel (%p211) target = $region36
        $region35: #{tpu_custom_call.1} parent=31 // pred_region
          %s214 = sand.u32 %s42, 1
          %s215 = scalar_lea.sflag [#allocation3], %s214
          %s216 = sand.u32 %s42, 1
          %s217 = smul.addr %s216, 8
          %s218 = scalar_lea.vmem [#allocation2], %s217
          %s220 = ssub.s32 128, 128
          %221 = vsyncadd %s215, %s220
          %s222 = sadd.s32 %s26, %s25
          %s223 = smul.addr %s222, 128
          %s224 = scalar_lea.hbm %s0, %s223
          %s226 = sshll.u32 %s218, 4
          %s227 = int_to_ptr.vmem [resolvable:$true] %s226
          %229 = dma.hbm_to_vmem [thread:$0]  %s224, 128, %s227, %s215
        $region36: #{tpu_custom_call.1} parent=31 // pred_fallthru
          _
      $region32: #{tpu_custom_call.1} parent=5 // pred_fallthru
        _
      %p230 = scmp.le.s32.totalorder 1, %s18
      %p231 = scmp.lt.s32.totalorder %s18, 3
      %p232 = pnand %p230, %p231
      %p233 = pneg %p232
      // Predicated region
      $region37: #{tpu_custom_call.1} parent=5 // pred_check
        _
      $region38: #{tpu_custom_call.1} parent=5 // pred_check_branch
        %235 = sbr.rel (%p232) target = $region40
      $region39: #{tpu_custom_call.1} parent=5 // pred_region
        %s236 = ssub.s32 %s18, 1
        %s237 = sand.u32 %s45, 1
        %s238 = scalar_lea.sflag [#allocation3], %s237
        %s239 = sand.u32 %s45, 1
        %s240 = smul.addr %s239, 8
        %s241 = scalar_lea.vmem [#allocation2], %s240
        // Predicated region
        $region41: #{tpu_custom_call.1} parent=39 // pred_check
          %p242 = pneg %p58
        $region42: #{tpu_custom_call.1} parent=39 // pred_check_branch
          %244 = sbr.rel (%p242) target = $region44
        $region43: #{tpu_custom_call.1} parent=39 // pred_region
          %245 = dma.done %s238, 128
        $region44: #{tpu_custom_call.1} parent=39 // pred_fallthru
          _
        // Predicated region
        $region45: #{tpu_custom_call.1} parent=39 // pred_check
          %p246 = pneg %p121
        $region46: #{tpu_custom_call.1} parent=39 // pred_check_branch
          %248 = sbr.rel (%p246) target = $region48
        $region47: #{tpu_custom_call.1} parent=39 // pred_region
          %249 = dma.done [#allocation6], 1024
        $region48: #{tpu_custom_call.1} parent=39 // pred_fallthru
          _
        %s250 = sand.u32 %s45, 1
        %s251 = scalar_lea.sflag [#allocation3], %s250
        %s252 = sand.u32 %s45, 1
        %s253 = smul.addr %s252, 8
        %s254 = scalar_lea.vmem [#allocation2], %s253
        %p255 = pneg %p58
        %p256 = pneg %p55
        %p257 = pneg %p79
        %p258 = pneg %p76
        %p259 = pneg %p100
        %p260 = pneg %p97
        %p261 = pneg %p121
        %p262 = pneg %p118
        %p263 = pneg %p142
        %p264 = pneg %p139
        %p265 = pneg %p170
        %p266 = pneg %p167
        %s267 = sand.u32 %s157, 1
        %s268 = scalar_lea.sflag [#allocation4], %s267
        %s269 = sand.u32 %s157, 1
        %s270 = smul.addr %s269, 32
        %s271 = scalar_lea.vmem [#allocation7], %s270
        %v273 = vld [vmem:[%s241] sm:$0xff]
        %v274 = vld [vmem:[%s1] sm:$0x1]
        %v275 = vld [vmem:[%s2] sm:$0x1]
        %276 = vadd.xlane.f32.xlu0 %v273
        %v277 = vpop.xlane.xlu0 %276
        %v278 = vrcp.pop 128.0
        %v279 = vmul.f32 %v277, %v278
        %v280 = vsub.f32 %v273, %v279
        %v281 = vmul.f32 %v280, %v280
        %282 = vadd.xlane.f32.xlu0 %v281
        %v283 = vpop.xlane.xlu0 %282
        %v284 = vmul.f32 %v283, %v278
        %v285 = vadd.f32 %v284, 1e-05
        %v286 = vrsqrt.pop %v285
        %v287 = vmul.f32 %v280, %v286
        %v289 = vlaneseq
        %v290 = vshrl.u32 %v289, 7
        %v291 = vsub.s32 0, %v290
        %v292 = vrot.slane %v274, %v291
        %v294 = vmul.f32 %v287, %v292
        %v296 = vlaneseq
        %v297 = vshrl.u32 %v296, 7
        %v298 = vsub.s32 0, %v297
        %v299 = vrot.slane %v275, %v298
        %v301 = vadd.f32 %v294, %v299
        %v302 = vpack.c.bf16 %v301, %v301
        %v303 = vld [vmem:[#allocation5] sm:$0xf]
        %v304 = vld [vmem:[#allocation5 + $0x4] sm:$0xf]
        %v305 = vld [vmem:[#allocation5 + $0x8] sm:$0xf]
        %v306 = vld [vmem:[#allocation5 + $0xc] sm:$0xf]
        %v307 = vld [vmem:[#allocation5 + $0x10] sm:$0xf]
        %v308 = vld [vmem:[#allocation5 + $0x14] sm:$0xf]
        %v309 = vld [vmem:[#allocation5 + $0x18] sm:$0xf]
        %v310 = vld [vmem:[#allocation5 + $0x1c] sm:$0xf]
        %v311 = vld [vmem:[#allocation5 + $0x20] sm:$0xf]
        %v312 = vld [vmem:[#allocation5 + $0x24] sm:$0xf]
        %v313 = vld [vmem:[#allocation5 + $0x28] sm:$0xf]
        %v314 = vld [vmem:[#allocation5 + $0x2c] sm:$0xf]
        %v315 = vld [vmem:[#allocation5 + $0x30] sm:$0xf]
        %v316 = vld [vmem:[#allocation5 + $0x34] sm:$0xf]
        %v317 = vld [vmem:[#allocation5 + $0x38] sm:$0xf]
        %v318 = vld [vmem:[#allocation5 + $0x3c] sm:$0xf]
        %v319 = vld [vmem:[%s4] sm:$0x1]
        %v321 = vlaneseq
        %v322 = vshrl.u32 %v321, 7
        %v323 = vsub.s32 0, %v322
        %v324 = vrot.slane %v319, %v323
        %v342 = vunpack.c.l.b16 %v303
        %v343 = vunpack.c.l.b16 %v304
        %v344 = vunpack.c.l.b16 %v305
        %v345 = vunpack.c.l.b16 %v306
        %v346 = vunpack.c.l.b16 %v307
        %v347 = vunpack.c.l.b16 %v308
        %v348 = vunpack.c.l.b16 %v309
        %v349 = vunpack.c.l.b16 %v310
        %v350 = vunpack.c.l.b16 %v311
        %v351 = vunpack.c.l.b16 %v312
        %v352 = vunpack.c.l.b16 %v313
        %v353 = vunpack.c.l.b16 %v314
        %v354 = vunpack.c.l.b16 %v315
        %v355 = vunpack.c.l.b16 %v316
        %v356 = vunpack.c.l.b16 %v317
        %v357 = vunpack.c.l.b16 %v318
        %v358 = vpack.c.b16 %v343, %v342
        %v359 = vpack.c.b16 %v345, %v344
        %v360 = vpack.c.b16 %v347, %v346
        %v361 = vpack.c.b16 %v349, %v348
        %v362 = vpack.c.b16 %v351, %v350
        %v363 = vpack.c.b16 %v353, %v352
        %v364 = vpack.c.b16 %v355, %v354
        %v365 = vpack.c.b16 %v357, %v356
        %374 = vmatprep.subr.bf16.mxu0 0
        %375 = vmatpush1.bf16.msra.mxu0 %v358
        %376 = vmatprep.subr.bf16.mxu0 0
        %377 = vmatpush1.bf16.msra.mxu0 %v359
        %378 = vmatprep.subr.bf16.mxu0 0
        %379 = vmatpush1.bf16.msra.mxu0 %v360
        %380 = vmatprep.subr.bf16.mxu0 0
        %381 = vmatpush1.bf16.msra.mxu0 %v361
        %382 = vmatprep.subr.bf16.mxu0 0
        %383 = vmatpush1.bf16.msra.mxu0 %v362
        %384 = vmatprep.subr.bf16.mxu0 0
        %385 = vmatpush1.bf16.msra.mxu0 %v363
        %386 = vmatprep.subr.bf16.mxu0 0
        %387 = vmatpush1.bf16.msra.mxu0 %v364
        %388 = vmatprep.subr.bf16.mxu0 0
        %389 = vmatpush1.bf16.msra.mxu0 %v365
        %390 = vmatprep.subr.bf16.mxu0 0
        %391 = vmatpush1.bf16.msra.mxu0 0
        %392 = vmatprep.subr.bf16.mxu0 0
        %393 = vmatpush1.bf16.msra.mxu0 0
        %394 = vmatprep.subr.bf16.mxu0 0
        %395 = vmatpush1.bf16.msra.mxu0 0
        %396 = vmatprep.subr.bf16.mxu0 0
        %397 = vmatpush1.bf16.msra.mxu0 0
        %398 = vmatprep.subr.bf16.mxu0 0
        %399 = vmatpush1.bf16.msra.mxu0 0
        %400 = vmatprep.subr.bf16.mxu0 0
        %401 = vmatpush1.bf16.msra.mxu0 0
        %402 = vmatprep.subr.bf16.mxu0 0
        %403 = vmatpush1.bf16.msra.mxu0 0
        %404 = vmatprep.subr.bf16.mxu0 0
        %405 = vmatpush1.bf16.msra.mxu0 0
        %406 = vmatprep.mubr.bf16.mxu0 0
        %407 = vmatmul.mubr.bf16.gmra.mrb[0].mxu0 %v302
        %v408 = vpop.f32.mrb[0].mxu0
        %v409 = vadd.f32 %v324, %v408
        %v410 = vpop.f32.mrb[0].mxu0
        %v411 = vpop.f32.mrb[0].mxu0
        %v412 = vpop.f32.mrb[0].mxu0
        %413 = vdwg.mxu0
        %v414 = vpack.c.bf16 %v409, %v409
        %vm415 = vcmask 125952
        %416 = vst.msk [vmem:[%s271] sm:$0xf] %vm415, %v414
        %v418 = vunpack.c.l.b16 %v414
        %v419 = vpack.c.b16 %v418, %v418
        %420 = vrot.lane.b32.xlu0 %v419, 112
        %v421 = vpop.permute.xlu0 %420
        %s423 = scalar_lea.vmem %s271, 4 [#allocation7]
        %424 = vst.msk [vmem:[%s423] sm:$0xf] %vm415, %v421
        %425 = vrot.lane.b32.xlu0 %v419, 96
        %v426 = vpop.permute.xlu0 %425
        %s428 = scalar_lea.vmem %s271, 8 [#allocation7]
        %429 = vst.msk [vmem:[%s428] sm:$0xf] %vm415, %v426
        %430 = vrot.lane.b32.xlu0 %v419, 80
        %v431 = vpop.permute.xlu0 %430
        %s433 = scalar_lea.vmem %s271, 12 [#allocation7]
        %434 = vst.msk [vmem:[%s433] sm:$0xf] %vm415, %v431
        %435 = vrot.lane.b32.xlu0 %v419, 64
        %v436 = vpop.permute.xlu0 %435
        %s438 = scalar_lea.vmem %s271, 16 [#allocation7]
        %439 = vst.msk [vmem:[%s438] sm:$0xf] %vm415, %v436
        %440 = vrot.lane.b32.xlu0 %v419, 48
        %v441 = vpop.permute.xlu0 %440
        %s443 = scalar_lea.vmem %s271, 20 [#allocation7]
        %444 = vst.msk [vmem:[%s443] sm:$0xf] %vm415, %v441
        %445 = vrot.lane.b32.xlu0 %v419, 32
        %v446 = vpop.permute.xlu0 %445
        %s448 = scalar_lea.vmem %s271, 24 [#allocation7]
        %449 = vst.msk [vmem:[%s448] sm:$0xf] %vm415, %v446
        %450 = vrot.lane.b32.xlu0 %v419, 16
        %v451 = vpop.permute.xlu0 %450
        %s453 = scalar_lea.vmem %s271, 28 [#allocation7]
        %454 = vst.msk [vmem:[%s453] sm:$0xf] %vm415, %v451
        %s455 = sand.u32 %s157, 1
        %s456 = scalar_lea.sflag [#allocation4], %s455
        %s457 = sand.u32 %s157, 1
        %s458 = smul.addr %s457, 32
        %s459 = scalar_lea.vmem [#allocation7], %s458
        // Predicated region
        $region49: #{tpu_custom_call.1} parent=39 // pred_check
          %p460 = pneg %p167
        $region50: #{tpu_custom_call.1} parent=39 // pred_check_branch
          %462 = sbr.rel (%p460) target = $region52
        $region51: #{tpu_custom_call.1} parent=39 // pred_region
          %s464 = ssub.s32 512, 512
          %465 = vsyncadd %s456, %s464
          %s466 = smul.addr %s27, 8
          %s467 = sadd.s32 %s28, %s466
          %s468 = smul.addr %s467, 64
          %s469 = scalar_lea.hbm %s5, %s468
          %s470 = sshll.u32 %s459, 4
          %s471 = int_to_ptr.vmem [resolvable:$true] %s470
          %476 = dma.vmem_to_hbm [thread:$0]  %s471, 512, %s469, %s456, 64, 64, 4
        $region52: #{tpu_custom_call.1} parent=39 // pred_fallthru
          _
      $region40: #{tpu_custom_call.1} parent=5 // pred_fallthru
        _
      %p477 = scmp.le.s32.totalorder 2, %s18
      // Predicated region
      $region53: #{tpu_custom_call.1} parent=5 // pred_check
        %p478 = pneg %p477
      $region54: #{tpu_custom_call.1} parent=5 // pred_check_branch
        %480 = sbr.rel (%p478) target = $region56
      $region55: #{tpu_custom_call.1} parent=5 // pred_region
        %s481 = ssub.s32 %s18, 2
        // Predicated region
        $region57: #{tpu_custom_call.1} parent=55 // pred_check
          %p482 = pneg %p173
        $region58: #{tpu_custom_call.1} parent=55 // pred_check_branch
          %484 = sbr.rel (%p482) target = $region60
        $region59: #{tpu_custom_call.1} parent=55 // pred_region
          %s485 = sand.u32 %s158, 1
          %s486 = scalar_lea.sflag [#allocation4], %s485
          %s487 = sand.u32 %s158, 1
          %s488 = smul.addr %s487, 32
          %s489 = scalar_lea.vmem [#allocation7], %s488
          %490 = dma.done %s486, 512
        $region60: #{tpu_custom_call.1} parent=55 // pred_fallthru
          _
      $region56: #{tpu_custom_call.1} parent=5 // pred_fallthru
        _
    $region6: #{tpu_custom_call.1} parent=1 // loop_footer
      %s22 = sadd.s32 1, %s18
    $region7: #{tpu_custom_call.1} parent=1 // loop_footer_branch
      %17 = sbr.rel target = $region3
    $region8: #{tpu_custom_call.1} parent=1 // loop_exit
      _
    %491 = vsyncpa [#allocation3], 1
    %s492 = scalar_lea.sflag [#allocation3], 1
    %493 = vsyncpa %s492, 1
    %494 = vsyncpa [#allocation6], 1
    %495 = vsyncpa [#allocation4], 1
    %s496 = scalar_lea.sflag [#allocation4], 1
    %497 = vsyncpa %s496, 1

</llo_original>
